<compile_context>
chip_gen: v7x
topology: tpu7x:2x2x1
jax: 0.10.0
libtpu: 0.0.40
codegen_flags: <defaults>
</compile_context>

<pallas_src>
import jax
import jax.numpy as jnp
import numpy as np
from jax import lax
from jax.experimental import pallas as pl
from jax.experimental.pallas import tpu as pltpu

# ---- problem sizes (small, deterministic) ----
B = 4             # batch
EMBED = 16        # embed_dim of each categorical embedding
TASKS_DIM = 16    # tasks_embed_dim
D_IN = 5 * EMBED + TASKS_DIM     # phase_branch=False -> 5 embeds + tasks = 96
HID = 32          # hidden_dim
NUM_LAYERS = 2    # num_layers
OUT_DIM = 32      # output_dim
NUM_PLAYERS, NUM_TRICKS, NUM_ACTIONS, NUM_TURNS, NUM_PHASES = 4, 8, 32, 4, 2
VOCAB_SIZES = (NUM_PLAYERS, NUM_TRICKS, NUM_ACTIONS, NUM_TURNS, NUM_PHASES)
TOTAL_VOCAB = int(sum(VOCAB_SIZES))  # 50
LN_EPS = 1e-5
HIGHEST = lax.Precision.HIGHEST

# ---- parameter-slab layout: (SLAB_ROWS, 128) f32, every section starts on an 8-sublane boundary
ROW_LN = 0                                   # row 0: gamma, row 1: beta   (lanes 0:D_IN)
ROW_W0 = 8                                   # rows 8..135   fused [wih0_t; whh0_t]  (128,128)
ROW_BIAS = ROW_W0 + (D_IN + HID)             # 136: bg0, 137: bg1, 138: bfc
ROW_W1 = ROW_BIAS + 8                        # rows 144..207 fused [wih1_t; whh1_t]  (64,128)
ROW_WFC = ROW_W1 + 2 * HID                   # rows 208..239 wfc_t (lanes 0:OUT_DIM)
ROW_EMB = ROW_WFC + HID                      # rows 240..289 packed embed table (lanes 0:EMBED)
SLAB_ROWS = ROW_EMB + ((TOTAL_VOCAB + 7) // 8) * 8   # 296


# -------------------- Pallas kernel: gather + LayerNorm + 2-layer LSTM step + FC --------------
def history_kernel(idx_ref, tasks_ref, state_ref, slab_ref, y_ref, state_out_ref):
    # ---- fused embedding gather + concat: x = [player|trick|action|turn|tasks|phase] ----
    # idx_ref: (5*B,) int32 in SMEM, already offset into the packed table (but not by ROW_EMB).
    rows = []
    for b in range(B):
        feats = []
        for j in range(4):                                       # player, trick, action, turn
            r = slab_ref[pl.ds(ROW_EMB + idx_ref[b * 5 + j], 1), :]   # (1, 128) dynamic row
            feats.append(r[:, :EMBED])                                # (1, 16)
        feats.append(tasks_ref[b:b + 1, :])                           # (1, TASKS_DIM)
        r = slab_ref[pl.ds(ROW_EMB + idx_ref[b * 5 + 4], 1), :]       # phase
        feats.append(r[:, :EMBED])
        rows.append(jnp.concatenate(feats, axis=1))                   # (1, D_IN)
    x = jnp.concatenate(rows, axis=0)                                 # (B, D_IN)

    # ---- LayerNorm over the feature (lane) axis, whole batch at once ----
    gamma = slab_ref[ROW_LN:ROW_LN + 1, :][:, :D_IN]
    beta = slab_ref[ROW_LN + 1:ROW_LN + 2, :][:, :D_IN]
    mu = jnp.mean(x, axis=-1, keepdims=True)
    var = jnp.mean((x - mu) ** 2, axis=-1, keepdims=True)
    xn = (x - mu) * lax.rsqrt(var + LN_EPS) * gamma + beta

    # ---- unpack lane-packed recurrent state [h0 | h1 | c0 | c1] ----
    st = state_ref[...]                                               # (B, 4*HID) = (4, 128)
    h0p, h1p = st[:, 0:HID], st[:, HID:2 * HID]
    c0p, c1p = st[:, 2 * HID:3 * HID], st[:, 3 * HID:4 * HID]

    # ---- one LSTM cell step: fused [input; hidden] matmul, gate layout permuted to [i,f,o,g] --
    def cell(inp, h_prev, c_prev, w_cat, bias):
        xz = jnp.concatenate([inp, h_prev], axis=-1)
        gates = jnp.dot(xz, w_cat, precision=HIGHEST,
                        preferred_element_type=jnp.float32) + bias    # (B, 4*HID)
        sg = jax.nn.sigmoid(gates[:, :3 * HID])                       # i, f, o (contiguous)
        g = jnp.tanh(gates[:, 3 * HID:])
        i, f, o = sg[:, :HID], sg[:, HID:2 * HID], sg[:, 2 * HID:3 * HID]
        c_new = f * c_prev + i * g
        return o * jnp.tanh(c_new), c_new

    w0 = slab_ref[ROW_W0:ROW_W0 + D_IN + HID, :]                      # (128, 128)
    w1 = slab_ref[ROW_W1:ROW_W1 + 2 * HID, :]                         # (64, 128)
    b0 = slab_ref[ROW_BIAS:ROW_BIAS + 1, :]                           # (1, 128)
    b1 = slab_ref[ROW_BIAS + 1:ROW_BIAS + 2, :]

    h0n, c0n = cell(xn, h0p, c0p, w0, b0)
    # inter-layer dropout is an eval-time no-op
    h1n, c1n = cell(h0n, h1p, c1p, w1, b1)

    # ---- fc head on the last layer's hidden state (post-fc dropout: eval no-op) ----
    wfc = slab_ref[ROW_WFC:ROW_WFC + HID, :]                          # (32, 128), zero-padded
    bfc = slab_ref[ROW_BIAS + 2:ROW_BIAS + 3, :][:, :OUT_DIM]
    y = jnp.dot(h1n, wfc, precision=HIGHEST,
                preferred_element_type=jnp.float32)[:, :OUT_DIM] + bfc

    # ---- single lane-dense state store + fc output ----
    state_out_ref[...] = jnp.concatenate([h0n, h1n, c0n, c1n], axis=-1)   # (B, 128)
    y_ref[...] = y


# -------------------- wrapper --------------------
_FLOPS = 2 * B * ((D_IN + HID) * 4 * HID + (2 * HID) * 4 * HID + HID * OUT_DIM)
_TRANS = 2 * B * (3 * HID + 2 * HID)
_BYTES = 4 * (SLAB_ROWS * 128 + B * TASKS_DIM + 2 * B * 4 * HID + B * OUT_DIM + 5 * B)


def history_model_forward(params, hist_player_idx, hist_trick, hist_action, hist_turn,
                          hist_phase, tasks_embed, h, c):
    # Flat, pre-offset indices into the packed embed table (tiny int op, fuses in the caller).
    idx = jnp.stack([hist_player_idx, hist_trick, hist_action, hist_turn, hist_phase],
                    axis=-1).astype(jnp.int32) + params["table_offsets"][None, :]
    idx_flat = idx.reshape(5 * B)
    # Lane-packed recurrent state [h0 | h1 | c0 | c1] -> (B, 128); aliased with the state output.
    state_in = jnp.concatenate([h[0], h[1], c[0], c[1]], axis=-1).astype(jnp.float32)

    smem = pl.BlockSpec(memory_space=pltpu.MemorySpace.SMEM)
    vmem = pl.BlockSpec(memory_space=pltpu.MemorySpace.VMEM)
    y, state_out = pl.pallas_call(
        history_kernel,
        out_shape=(jax.ShapeDtypeStruct((B, OUT_DIM), jnp.float32),
                   jax.ShapeDtypeStruct((B, 2 * NUM_LAYERS * HID), jnp.float32)),
        in_specs=[smem, vmem, vmem, vmem],
        out_specs=(vmem, vmem),
        input_output_aliases={2: 1},          # state_in -> state_out (decode-loop friendly)
        cost_estimate=pl.CostEstimate(flops=_FLOPS, transcendentals=_TRANS,
                                      bytes_accessed=_BYTES),
    )(idx_flat, tasks_embed.astype(jnp.float32), state_in, params["slab"])

    h_out = jnp.stack([state_out[:, 0:HID], state_out[:, HID:2 * HID]], axis=0)
    c_out = jnp.stack([state_out[:, 2 * HID:3 * HID], state_out[:, 3 * HID:4 * HID]], axis=0)
    return y, h_out, c_out


# -------------------- pure-JAX reference (PyTorch semantics / layout) --------------------
def reference_forward(params, hist_player_idx, hist_trick, hist_action, hist_turn,
                      hist_phase, tasks_embed, h, c):
    idx = jnp.stack([hist_player_idx, hist_trick, hist_action, hist_turn, hist_phase],
                    axis=-1).astype(jnp.int32) + params["table_offsets"][None, :]
    emb = jnp.take(params["embed_table"], idx, axis=0)                    # (B, 5, E)
    # concat order of the module: player, trick, action, turn, tasks, phase
    x = jnp.concatenate([emb[:, 0], emb[:, 1], emb[:, 2], emb[:, 3],
                         tasks_embed.astype(jnp.float32), emb[:, 4]], axis=-1)
    mu = x.mean(-1, keepdims=True)
    var = ((x - mu) ** 2).mean(-1, keepdims=True)
    xn = (x - mu) / jnp.sqrt(var + LN_EPS) * params["ln_gamma"] + params["ln_beta"]

    def cell(inp, h_prev, c_prev, wih, whh, bih, bhh):
        gates = (jnp.dot(inp, wih.T, precision=HIGHEST)
                 + jnp.dot(h_prev, whh.T, precision=HIGHEST) + bih + bhh)
        i = jax.nn.sigmoid(gates[:, 0 * HID:1 * HID])
        f = jax.nn.sigmoid(gates[:, 1 * HID:2 * HID])
        g = jnp.tanh(gates[:, 2 * HID:3 * HID])
        o = jax.nn.sigmoid(gates[:, 3 * HID:4 * HID])
        c_new = f * c_prev + i * g
        return o * jnp.tanh(c_new), c_new

    h0n, c0n = cell(xn, h[0], c[0], params["wih0"], params["whh0"], params["bih0"], params["bhh0"])
    h1n, c1n = cell(h0n, h[1], c[1], params["wih1"], params["whh1"], params["bih1"], params["bhh1"])
    y = jnp.dot(h1n, params["wfc"].T, precision=HIGHEST) + params["bfc"]
    return y, jnp.stack([h0n, h1n]), jnp.stack([c0n, c1n])


# -------------------- parameter init (PyTorch layout) + slab packing --------------------
def build_slab(p):
    """Pack every parameter into one (SLAB_ROWS, 128) f32 slab for a single VMEM input DMA."""
    slab = np.zeros((SLAB_ROWS, 128), np.float32)
    slab[ROW_LN, :D_IN] = np.asarray(p["ln_gamma"])
    slab[ROW_LN + 1, :D_IN] = np.asarray(p["ln_beta"])
    # gate permutation: PyTorch [i, f, g, o] -> kernel [i, f, o, g]
    perm = np.concatenate([np.arange(0, 2 * HID), np.arange(3 * HID, 4 * HID),
                           np.arange(2 * HID, 3 * HID)])

    def fuse(wih, whh, bih, bhh):
        w_cat = np.concatenate([np.asarray(wih).T, np.asarray(whh).T], axis=0)   # (in+H, 4H)
        bias = np.asarray(bih) + np.asarray(bhh)
        return w_cat[:, perm], bias[perm]

    w0, b0 = fuse(p["wih0"], p["whh0"], p["bih0"], p["bhh0"])
    w1, b1 = fuse(p["wih1"], p["whh1"], p["bih1"], p["bhh1"])
    slab[ROW_W0:ROW_W0 + D_IN + HID, :4 * HID] = w0
    slab[ROW_W1:ROW_W1 + 2 * HID, :4 * HID] = w1
    slab[ROW_BIAS, :4 * HID] = b0
    slab[ROW_BIAS + 1, :4 * HID] = b1
    slab[ROW_BIAS + 2, :OUT_DIM] = np.asarray(p["bfc"])
    slab[ROW_WFC:ROW_WFC + HID, :OUT_DIM] = np.asarray(p["wfc"]).T
    slab[ROW_EMB:ROW_EMB + TOTAL_VOCAB, :EMBED] = np.asarray(p["embed_table"])
    return jnp.asarray(slab)


def init_params(key):
    ks = jax.random.split(key, 16)
    s = 0.1
    offsets = np.concatenate([[0], np.cumsum(VOCAB_SIZES)[:-1]]).astype(np.int32)
    # TODO(synk): player/trick/action/turn/phase embed module internals were not provided;
    # synthesized as plain lookup tables (trick_embed's phase arg / action_embed's single_step
    # flag are not modeled), packed into one table.
    p = {
        "embed_table": jax.random.normal(ks[0], (TOTAL_VOCAB, EMBED), jnp.float32) * s,
        "table_offsets": jnp.asarray(offsets, jnp.int32),
        "ln_gamma": 1.0 + jax.random.normal(ks[1], (D_IN,), jnp.float32) * s,
        "ln_beta": jax.random.normal(ks[2], (D_IN,), jnp.float32) * s,
        # PyTorch nn.LSTM layout: weight_ih_l{k} (4H, in), weight_hh_l{k} (4H, H), biases (4H,)
        "wih0": jax.random.normal(ks[3], (4 * HID, D_IN), jnp.float32) * s,
        "whh0": jax.random.normal(ks[4], (4 * HID, HID), jnp.float32) * s,
        "bih0": jax.random.normal(ks[5], (4 * HID,), jnp.float32) * s,
        "bhh0": jax.random.normal(ks[6], (4 * HID,), jnp.float32) * s,
        "wih1": jax.random.normal(ks[7], (4 * HID, HID), jnp.float32) * s,
        "whh1": jax.random.normal(ks[8], (4 * HID, HID), jnp.float32) * s,
        "bih1": jax.random.normal(ks[9], (4 * HID,), jnp.float32) * s,
        "bhh1": jax.random.normal(ks[10], (4 * HID,), jnp.float32) * s,
        "wfc": jax.random.normal(ks[11], (OUT_DIM, HID), jnp.float32) * s,
        "bfc": jax.random.normal(ks[12], (OUT_DIM,), jnp.float32) * s,
    }
    p["slab"] = build_slab(p)
    return p


if __name__ == "__main__":
    root = jax.random.PRNGKey(0)
    pkey, k_idx, k_tasks, k_h, k_c = jax.random.split(root, 5)
    params = init_params(pkey)

    kk = jax.random.split(k_idx, 5)
    hist_player_idx = jax.random.randint(kk[0], (B,), 0, NUM_PLAYERS).astype(jnp.int32)
    hist_trick = jax.random.randint(kk[1], (B,), 0, NUM_TRICKS).astype(jnp.int32)
    hist_action = jax.random.randint(kk[2], (B,), 0, NUM_ACTIONS).astype(jnp.int32)
    hist_turn = jax.random.randint(kk[3], (B,), 0, NUM_TURNS).astype(jnp.int32)
    hist_phase = jax.random.randint(kk[4], (B,), 0, NUM_PHASES).astype(jnp.int32)
    tasks_embed = jax.random.normal(k_tasks, (B, TASKS_DIM), jnp.float32)
    h0 = jax.random.normal(k_h, (NUM_LAYERS, B, HID), jnp.float32) * 0.1
    c0 = jax.random.normal(k_c, (NUM_LAYERS, B, HID), jnp.float32) * 0.1

    fwd = jax.jit(history_model_forward)
    y, h_out, c_out = fwd(params, hist_player_idx, hist_trick, hist_action,
                          hist_turn, hist_phase, tasks_embed, h0, c0)
    y, h_out, c_out = map(jax.block_until_ready, (y, h_out, c_out))

    y_r, h_r, c_r = reference_forward(params, hist_player_idx, hist_trick, hist_action,
                                      hist_turn, hist_phase, tasks_embed, h0, c0)
    y_r, h_r, c_r = map(jax.block_until_ready, (y_r, h_r, c_r))

    assert y.shape == (B, OUT_DIM)
    assert h_out.shape == (NUM_LAYERS, B, HID) and c_out.shape == (NUM_LAYERS, B, HID)
    for got, ref, name in ((y, y_r, "y"), (h_out, h_r, "h"), (c_out, c_r, "c")):
        assert np.allclose(np.asarray(got), np.asarray(ref), rtol=1e-4, atol=1e-5), (
            "mismatch in %s:\n%s\n%s" % (name, np.asarray(got), np.asarray(ref)))

    print("KERNEL_OK")
</pallas_src>

<mosaic_0001>
module attributes {stable_mosaic.version = 11 : i64} {
  func.func @history_kernel(%arg0: memref<20xi32, #tpu.memory_space<smem>>, %arg1: memref<4x16xf32, #tpu.memory_space<vmem>>, %arg2: memref<4x128xf32, #tpu.memory_space<vmem>>, %arg3: memref<296x128xf32, #tpu.memory_space<vmem>>, %arg4: memref<4x32xf32, #tpu.memory_space<vmem>>, %arg5: memref<4x128xf32, #tpu.memory_space<vmem>>) attributes {dimension_semantics = [], scalar_prefetch = 0 : i64, scratch_operands = 0 : i64, tpu.core_type = #tpu.core_type<tc>} {
    %c0 = arith.constant 0 : index
    %0 = memref.load %arg0[%c0] : memref<20xi32, #tpu.memory_space<smem>>
    %c240_i32 = arith.constant 240 : i32
    %1 = arith.addi %c240_i32, %0 : i32
    %2 = arith.index_cast %1 : i32 to index
    %c0_0 = arith.constant 0 : index
    %3 = vector.load %arg3[%2, %c0_0] : memref<296x128xf32, #tpu.memory_space<vmem>>, vector<1x128xf32>
    %4 = vector.extract_strided_slice %3 {offsets = [0, 0], sizes = [1, 16], strides = [1, 1]} : vector<1x128xf32> to vector<1x16xf32>
    %c1 = arith.constant 1 : index
    %5 = memref.load %arg0[%c1] : memref<20xi32, #tpu.memory_space<smem>>
    %c240_i32_1 = arith.constant 240 : i32
    %6 = arith.addi %c240_i32_1, %5 : i32
    %7 = arith.index_cast %6 : i32 to index
    %c0_2 = arith.constant 0 : index
    %8 = vector.load %arg3[%7, %c0_2] : memref<296x128xf32, #tpu.memory_space<vmem>>, vector<1x128xf32>
    %9 = vector.extract_strided_slice %8 {offsets = [0, 0], sizes = [1, 16], strides = [1, 1]} : vector<1x128xf32> to vector<1x16xf32>
    %c2 = arith.constant 2 : index
    %10 = memref.load %arg0[%c2] : memref<20xi32, #tpu.memory_space<smem>>
    %c240_i32_3 = arith.constant 240 : i32
    %11 = arith.addi %c240_i32_3, %10 : i32
    %12 = arith.index_cast %11 : i32 to index
    %c0_4 = arith.constant 0 : index
    %13 = vector.load %arg3[%12, %c0_4] : memref<296x128xf32, #tpu.memory_space<vmem>>, vector<1x128xf32>
    %14 = vector.extract_strided_slice %13 {offsets = [0, 0], sizes = [1, 16], strides = [1, 1]} : vector<1x128xf32> to vector<1x16xf32>
    %c3 = arith.constant 3 : index
    %15 = memref.load %arg0[%c3] : memref<20xi32, #tpu.memory_space<smem>>
    %c240_i32_5 = arith.constant 240 : i32
    %16 = arith.addi %c240_i32_5, %15 : i32
    %17 = arith.index_cast %16 : i32 to index
    %c0_6 = arith.constant 0 : index
    %18 = vector.load %arg3[%17, %c0_6] : memref<296x128xf32, #tpu.memory_space<vmem>>, vector<1x128xf32>
    %19 = vector.extract_strided_slice %18 {offsets = [0, 0], sizes = [1, 16], strides = [1, 1]} : vector<1x128xf32> to vector<1x16xf32>
    %c0_7 = arith.constant 0 : index
    %c0_8 = arith.constant 0 : index
    %20 = vector.load %arg1[%c0_7, %c0_8] : memref<4x16xf32, #tpu.memory_space<vmem>>, vector<1x16xf32>
    %c4 = arith.constant 4 : index
    %21 = memref.load %arg0[%c4] : memref<20xi32, #tpu.memory_space<smem>>
    %c240_i32_9 = arith.constant 240 : i32
    %22 = arith.addi %c240_i32_9, %21 : i32
    %23 = arith.index_cast %22 : i32 to index
    %c0_10 = arith.constant 0 : index
    %24 = vector.load %arg3[%23, %c0_10] : memref<296x128xf32, #tpu.memory_space<vmem>>, vector<1x128xf32>
    %25 = vector.extract_strided_slice %24 {offsets = [0, 0], sizes = [1, 16], strides = [1, 1]} : vector<1x128xf32> to vector<1x16xf32>
    %26 = tpu.concatenate %4, %9, %14, %19, %20, %25 in 1 : vector<1x16xf32>, vector<1x16xf32>, vector<1x16xf32>, vector<1x16xf32>, vector<1x16xf32>, vector<1x16xf32> -> vector<1x96xf32>
    %c5 = arith.constant 5 : index
    %27 = memref.load %arg0[%c5] : memref<20xi32, #tpu.memory_space<smem>>
    %c240_i32_11 = arith.constant 240 : i32
    %28 = arith.addi %c240_i32_11, %27 : i32
    %29 = arith.index_cast %28 : i32 to index
    %c0_12 = arith.constant 0 : index
    %30 = vector.load %arg3[%29, %c0_12] : memref<296x128xf32, #tpu.memory_space<vmem>>, vector<1x128xf32>
    %31 = vector.extract_strided_slice %30 {offsets = [0, 0], sizes = [1, 16], strides = [1, 1]} : vector<1x128xf32> to vector<1x16xf32>
    %c6 = arith.constant 6 : index
    %32 = memref.load %arg0[%c6] : memref<20xi32, #tpu.memory_space<smem>>
    %c240_i32_13 = arith.constant 240 : i32
    %33 = arith.addi %c240_i32_13, %32 : i32
    %34 = arith.index_cast %33 : i32 to index
    %c0_14 = arith.constant 0 : index
    %35 = vector.load %arg3[%34, %c0_14] : memref<296x128xf32, #tpu.memory_space<vmem>>, vector<1x128xf32>
    %36 = vector.extract_strided_slice %35 {offsets = [0, 0], sizes = [1, 16], strides = [1, 1]} : vector<1x128xf32> to vector<1x16xf32>
    %c7 = arith.constant 7 : index
    %37 = memref.load %arg0[%c7] : memref<20xi32, #tpu.memory_space<smem>>
    %c240_i32_15 = arith.constant 240 : i32
    %38 = arith.addi %c240_i32_15, %37 : i32
    %39 = arith.index_cast %38 : i32 to index
    %c0_16 = arith.constant 0 : index
    %40 = vector.load %arg3[%39, %c0_16] : memref<296x128xf32, #tpu.memory_space<vmem>>, vector<1x128xf32>
    %41 = vector.extract_strided_slice %40 {offsets = [0, 0], sizes = [1, 16], strides = [1, 1]} : vector<1x128xf32> to vector<1x16xf32>
    %c8 = arith.constant 8 : index
    %42 = memref.load %arg0[%c8] : memref<20xi32, #tpu.memory_space<smem>>
    %c240_i32_17 = arith.constant 240 : i32
    %43 = arith.addi %c240_i32_17, %42 : i32
    %44 = arith.index_cast %43 : i32 to index
    %c0_18 = arith.constant 0 : index
    %45 = vector.load %arg3[%44, %c0_18] : memref<296x128xf32, #tpu.memory_space<vmem>>, vector<1x128xf32>
    %46 = vector.extract_strided_slice %45 {offsets = [0, 0], sizes = [1, 16], strides = [1, 1]} : vector<1x128xf32> to vector<1x16xf32>
    %c1_19 = arith.constant 1 : index
    %c0_20 = arith.constant 0 : index
    %47 = vector.load %arg1[%c1_19, %c0_20] : memref<4x16xf32, #tpu.memory_space<vmem>>, vector<1x16xf32>
    %c9 = arith.constant 9 : index
    %48 = memref.load %arg0[%c9] : memref<20xi32, #tpu.memory_space<smem>>
    %c240_i32_21 = arith.constant 240 : i32
    %49 = arith.addi %c240_i32_21, %48 : i32
    %50 = arith.index_cast %49 : i32 to index
    %c0_22 = arith.constant 0 : index
    %51 = vector.load %arg3[%50, %c0_22] : memref<296x128xf32, #tpu.memory_space<vmem>>, vector<1x128xf32>
    %52 = vector.extract_strided_slice %51 {offsets = [0, 0], sizes = [1, 16], strides = [1, 1]} : vector<1x128xf32> to vector<1x16xf32>
    %53 = tpu.concatenate %31, %36, %41, %46, %47, %52 in 1 : vector<1x16xf32>, vector<1x16xf32>, vector<1x16xf32>, vector<1x16xf32>, vector<1x16xf32>, vector<1x16xf32> -> vector<1x96xf32>
    %c10 = arith.constant 10 : index
    %54 = memref.load %arg0[%c10] : memref<20xi32, #tpu.memory_space<smem>>
    %c240_i32_23 = arith.constant 240 : i32
    %55 = arith.addi %c240_i32_23, %54 : i32
    %56 = arith.index_cast %55 : i32 to index
    %c0_24 = arith.constant 0 : index
    %57 = vector.load %arg3[%56, %c0_24] : memref<296x128xf32, #tpu.memory_space<vmem>>, vector<1x128xf32>
    %58 = vector.extract_strided_slice %57 {offsets = [0, 0], sizes = [1, 16], strides = [1, 1]} : vector<1x128xf32> to vector<1x16xf32>
    %c11 = arith.constant 11 : index
    %59 = memref.load %arg0[%c11] : memref<20xi32, #tpu.memory_space<smem>>
    %c240_i32_25 = arith.constant 240 : i32
    %60 = arith.addi %c240_i32_25, %59 : i32
    %61 = arith.index_cast %60 : i32 to index
    %c0_26 = arith.constant 0 : index
    %62 = vector.load %arg3[%61, %c0_26] : memref<296x128xf32, #tpu.memory_space<vmem>>, vector<1x128xf32>
    %63 = vector.extract_strided_slice %62 {offsets = [0, 0], sizes = [1, 16], strides = [1, 1]} : vector<1x128xf32> to vector<1x16xf32>
    %c12 = arith.constant 12 : index
    %64 = memref.load %arg0[%c12] : memref<20xi32, #tpu.memory_space<smem>>
    %c240_i32_27 = arith.constant 240 : i32
    %65 = arith.addi %c240_i32_27, %64 : i32
    %66 = arith.index_cast %65 : i32 to index
    %c0_28 = arith.constant 0 : index
    %67 = vector.load %arg3[%66, %c0_28] : memref<296x128xf32, #tpu.memory_space<vmem>>, vector<1x128xf32>
    %68 = vector.extract_strided_slice %67 {offsets = [0, 0], sizes = [1, 16], strides = [1, 1]} : vector<1x128xf32> to vector<1x16xf32>
    %c13 = arith.constant 13 : index
    %69 = memref.load %arg0[%c13] : memref<20xi32, #tpu.memory_space<smem>>
    %c240_i32_29 = arith.constant 240 : i32
    %70 = arith.addi %c240_i32_29, %69 : i32
    %71 = arith.index_cast %70 : i32 to index
    %c0_30 = arith.constant 0 : index
    %72 = vector.load %arg3[%71, %c0_30] : memref<296x128xf32, #tpu.memory_space<vmem>>, vector<1x128xf32>
    %73 = vector.extract_strided_slice %72 {offsets = [0, 0], sizes = [1, 16], strides = [1, 1]} : vector<1x128xf32> to vector<1x16xf32>
    %c2_31 = arith.constant 2 : index
    %c0_32 = arith.constant 0 : index
    %74 = vector.load %arg1[%c2_31, %c0_32] : memref<4x16xf32, #tpu.memory_space<vmem>>, vector<1x16xf32>
    %c14 = arith.constant 14 : index
    %75 = memref.load %arg0[%c14] : memref<20xi32, #tpu.memory_space<smem>>
    %c240_i32_33 = arith.constant 240 : i32
    %76 = arith.addi %c240_i32_33, %75 : i32
    %77 = arith.index_cast %76 : i32 to index
    %c0_34 = arith.constant 0 : index
    %78 = vector.load %arg3[%77, %c0_34] : memref<296x128xf32, #tpu.memory_space<vmem>>, vector<1x128xf32>
    %79 = vector.extract_strided_slice %78 {offsets = [0, 0], sizes = [1, 16], strides = [1, 1]} : vector<1x128xf32> to vector<1x16xf32>
    %80 = tpu.concatenate %58, %63, %68, %73, %74, %79 in 1 : vector<1x16xf32>, vector<1x16xf32>, vector<1x16xf32>, vector<1x16xf32>, vector<1x16xf32>, vector<1x16xf32> -> vector<1x96xf32>
    %c15 = arith.constant 15 : index
    %81 = memref.load %arg0[%c15] : memref<20xi32, #tpu.memory_space<smem>>
    %c240_i32_35 = arith.constant 240 : i32
    %82 = arith.addi %c240_i32_35, %81 : i32
    %83 = arith.index_cast %82 : i32 to index
    %c0_36 = arith.constant 0 : index
    %84 = vector.load %arg3[%83, %c0_36] : memref<296x128xf32, #tpu.memory_space<vmem>>, vector<1x128xf32>
    %85 = vector.extract_strided_slice %84 {offsets = [0, 0], sizes = [1, 16], strides = [1, 1]} : vector<1x128xf32> to vector<1x16xf32>
    %c16 = arith.constant 16 : index
    %86 = memref.load %arg0[%c16] : memref<20xi32, #tpu.memory_space<smem>>
    %c240_i32_37 = arith.constant 240 : i32
    %87 = arith.addi %c240_i32_37, %86 : i32
    %88 = arith.index_cast %87 : i32 to index
    %c0_38 = arith.constant 0 : index
    %89 = vector.load %arg3[%88, %c0_38] : memref<296x128xf32, #tpu.memory_space<vmem>>, vector<1x128xf32>
    %90 = vector.extract_strided_slice %89 {offsets = [0, 0], sizes = [1, 16], strides = [1, 1]} : vector<1x128xf32> to vector<1x16xf32>
    %c17 = arith.constant 17 : index
    %91 = memref.load %arg0[%c17] : memref<20xi32, #tpu.memory_space<smem>>
    %c240_i32_39 = arith.constant 240 : i32
    %92 = arith.addi %c240_i32_39, %91 : i32
    %93 = arith.index_cast %92 : i32 to index
    %c0_40 = arith.constant 0 : index
    %94 = vector.load %arg3[%93, %c0_40] : memref<296x128xf32, #tpu.memory_space<vmem>>, vector<1x128xf32>
    %95 = vector.extract_strided_slice %94 {offsets = [0, 0], sizes = [1, 16], strides = [1, 1]} : vector<1x128xf32> to vector<1x16xf32>
    %c18 = arith.constant 18 : index
    %96 = memref.load %arg0[%c18] : memref<20xi32, #tpu.memory_space<smem>>
    %c240_i32_41 = arith.constant 240 : i32
    %97 = arith.addi %c240_i32_41, %96 : i32
    %98 = arith.index_cast %97 : i32 to index
    %c0_42 = arith.constant 0 : index
    %99 = vector.load %arg3[%98, %c0_42] : memref<296x128xf32, #tpu.memory_space<vmem>>, vector<1x128xf32>
    %100 = vector.extract_strided_slice %99 {offsets = [0, 0], sizes = [1, 16], strides = [1, 1]} : vector<1x128xf32> to vector<1x16xf32>
    %c3_43 = arith.constant 3 : index
    %c0_44 = arith.constant 0 : index
    %101 = vector.load %arg1[%c3_43, %c0_44] : memref<4x16xf32, #tpu.memory_space<vmem>>, vector<1x16xf32>
    %c19 = arith.constant 19 : index
    %102 = memref.load %arg0[%c19] : memref<20xi32, #tpu.memory_space<smem>>
    %c240_i32_45 = arith.constant 240 : i32
    %103 = arith.addi %c240_i32_45, %102 : i32
    %104 = arith.index_cast %103 : i32 to index
    %c0_46 = arith.constant 0 : index
    %105 = vector.load %arg3[%104, %c0_46] : memref<296x128xf32, #tpu.memory_space<vmem>>, vector<1x128xf32>
    %106 = vector.extract_strided_slice %105 {offsets = [0, 0], sizes = [1, 16], strides = [1, 1]} : vector<1x128xf32> to vector<1x16xf32>
    %107 = tpu.concatenate %85, %90, %95, %100, %101, %106 in 1 : vector<1x16xf32>, vector<1x16xf32>, vector<1x16xf32>, vector<1x16xf32>, vector<1x16xf32>, vector<1x16xf32> -> vector<1x96xf32>
    %108 = tpu.concatenate %26, %53, %80, %107 in 0 : vector<1x96xf32>, vector<1x96xf32>, vector<1x96xf32>, vector<1x96xf32> -> vector<4x96xf32>
    %c0_47 = arith.constant 0 : index
    %c0_48 = arith.constant 0 : index
    %109 = vector.load %arg3[%c0_47, %c0_48] : memref<296x128xf32, #tpu.memory_space<vmem>>, vector<1x128xf32>
    %110 = vector.extract_strided_slice %109 {offsets = [0, 0], sizes = [1, 96], strides = [1, 1]} : vector<1x128xf32> to vector<1x96xf32>
    %c1_49 = arith.constant 1 : index
    %c0_50 = arith.constant 0 : index
    %111 = vector.load %arg3[%c1_49, %c0_50] : memref<296x128xf32, #tpu.memory_space<vmem>>, vector<1x128xf32>
    %112 = vector.extract_strided_slice %111 {offsets = [0, 0], sizes = [1, 96], strides = [1, 1]} : vector<1x128xf32> to vector<1x96xf32>
    %cst = arith.constant dense<0.000000e+00> : vector<4xf32>
    %113 = vector.multi_reduction <add>, %108, %cst [1] : vector<4x96xf32> to vector<4xf32>
    %114 = vector.shape_cast %113 : vector<4xf32> to vector<4x1xf32>
    %cst_51 = arith.constant 9.600000e+01 : f32
    %115 = vector.broadcast %cst_51 : f32 to vector<4x1xf32>
    %116 = arith.divf %114, %115 : vector<4x1xf32>
    %117 = vector.broadcast %116 : vector<4x1xf32> to vector<4x96xf32>
    %118 = arith.subf %108, %117 : vector<4x96xf32>
    %119 = arith.mulf %118, %118 : vector<4x96xf32>
    %cst_52 = arith.constant dense<0.000000e+00> : vector<4xf32>
    %120 = vector.multi_reduction <add>, %119, %cst_52 [1] : vector<4x96xf32> to vector<4xf32>
    %121 = vector.shape_cast %120 : vector<4xf32> to vector<4x1xf32>
    %cst_53 = arith.constant 9.600000e+01 : f32
    %122 = vector.broadcast %cst_53 : f32 to vector<4x1xf32>
    %123 = arith.divf %121, %122 : vector<4x1xf32>
    %124 = vector.broadcast %116 : vector<4x1xf32> to vector<4x96xf32>
    %125 = arith.subf %108, %124 : vector<4x96xf32>
    %cst_54 = arith.constant 9.99999974E-6 : f32
    %126 = vector.broadcast %cst_54 : f32 to vector<4x1xf32>
    %127 = arith.addf %123, %126 : vector<4x1xf32>
    %128 = math.rsqrt %127 : vector<4x1xf32>
    %129 = vector.broadcast %128 : vector<4x1xf32> to vector<4x96xf32>
    %130 = arith.mulf %125, %129 : vector<4x96xf32>
    %131 = vector.broadcast %110 : vector<1x96xf32> to vector<4x96xf32>
    %132 = arith.mulf %130, %131 : vector<4x96xf32>
    %133 = vector.broadcast %112 : vector<1x96xf32> to vector<4x96xf32>
    %134 = arith.addf %132, %133 : vector<4x96xf32>
    %c0_55 = arith.constant 0 : index
    %c0_56 = arith.constant 0 : index
    %135 = vector.load %arg2[%c0_55, %c0_56] : memref<4x128xf32, #tpu.memory_space<vmem>>, vector<4x128xf32>
    %136 = vector.extract_strided_slice %135 {offsets = [0, 0], sizes = [4, 32], strides = [1, 1]} : vector<4x128xf32> to vector<4x32xf32>
    %137 = vector.extract_strided_slice %135 {offsets = [0, 32], sizes = [4, 32], strides = [1, 1]} : vector<4x128xf32> to vector<4x32xf32>
    %138 = vector.extract_strided_slice %135 {offsets = [0, 64], sizes = [4, 32], strides = [1, 1]} : vector<4x128xf32> to vector<4x32xf32>
    %139 = vector.extract_strided_slice %135 {offsets = [0, 96], sizes = [4, 32], strides = [1, 1]} : vector<4x128xf32> to vector<4x32xf32>
    %c8_57 = arith.constant 8 : index
    %c0_58 = arith.constant 0 : index
    %140 = vector.load %arg3[%c8_57, %c0_58] : memref<296x128xf32, #tpu.memory_space<vmem>>, vector<128x128xf32>
    %c144 = arith.constant 144 : index
    %c0_59 = arith.constant 0 : index
    %141 = vector.load %arg3[%c144, %c0_59] : memref<296x128xf32, #tpu.memory_space<vmem>>, vector<64x128xf32>
    %c136 = arith.constant 136 : index
    %c0_60 = arith.constant 0 : index
    %142 = vector.load %arg3[%c136, %c0_60] : memref<296x128xf32, #tpu.memory_space<vmem>>, vector<1x128xf32>
    %c137 = arith.constant 137 : index
    %c0_61 = arith.constant 0 : index
    %143 = vector.load %arg3[%c137, %c0_61] : memref<296x128xf32, #tpu.memory_space<vmem>>, vector<1x128xf32>
    %144 = tpu.concatenate %134, %136 in 1 : vector<4x96xf32>, vector<4x32xf32> -> vector<4x128xf32>
    %cst_62 = arith.constant dense<0.000000e+00> : vector<4x128xf32>
    %145 = tpu.matmul %144, %140, %cst_62 {dimension_numbers = #tpu.dot_dimension_numbers<[1], [0], [0], [1], [0, 0, 1, 1], [], []>, precision = #tpu.contract_precision<fp32>} : vector<4x128xf32>, vector<128x128xf32>, vector<4x128xf32> -> vector<4x128xf32>
    %146 = vector.broadcast %142 : vector<1x128xf32> to vector<4x128xf32>
    %147 = arith.addf %145, %146 : vector<4x128xf32>
    %148 = vector.extract_strided_slice %147 {offsets = [0, 0], sizes = [4, 96], strides = [1, 1]} : vector<4x128xf32> to vector<4x96xf32>
    %149 = arith.negf %148 : vector<4x96xf32>
    %150 = math.exp %149 : vector<4x96xf32>
    %cst_63 = arith.constant 1.000000e+00 : f32
    %151 = vector.broadcast %cst_63 : f32 to vector<4x96xf32>
    %152 = arith.addf %151, %150 : vector<4x96xf32>
    %153 = arith.divf %151, %152 : vector<4x96xf32>
    %154 = vector.extract_strided_slice %147 {offsets = [0, 96], sizes = [4, 32], strides = [1, 1]} : vector<4x128xf32> to vector<4x32xf32>
    %155 = math.tanh %154 : vector<4x32xf32>
    %156 = vector.extract_strided_slice %153 {offsets = [0, 0], sizes = [4, 32], strides = [1, 1]} : vector<4x96xf32> to vector<4x32xf32>
    %157 = vector.extract_strided_slice %153 {offsets = [0, 32], sizes = [4, 32], strides = [1, 1]} : vector<4x96xf32> to vector<4x32xf32>
    %158 = vector.extract_strided_slice %153 {offsets = [0, 64], sizes = [4, 32], strides = [1, 1]} : vector<4x96xf32> to vector<4x32xf32>
    %159 = arith.mulf %157, %138 : vector<4x32xf32>
    %160 = arith.mulf %156, %155 : vector<4x32xf32>
    %161 = arith.addf %159, %160 : vector<4x32xf32>
    %162 = math.tanh %161 : vector<4x32xf32>
    %163 = arith.mulf %158, %162 : vector<4x32xf32>
    %164 = tpu.concatenate %163, %137 in 1 : vector<4x32xf32>, vector<4x32xf32> -> vector<4x64xf32>
    %cst_64 = arith.constant dense<0.000000e+00> : vector<4x128xf32>
    %165 = tpu.matmul %164, %141, %cst_64 {dimension_numbers = #tpu.dot_dimension_numbers<[1], [0], [0], [1], [0, 0, 1, 1], [], []>, precision = #tpu.contract_precision<fp32>} : vector<4x64xf32>, vector<64x128xf32>, vector<4x128xf32> -> vector<4x128xf32>
    %166 = vector.broadcast %143 : vector<1x128xf32> to vector<4x128xf32>
    %167 = arith.addf %165, %166 : vector<4x128xf32>
    %168 = vector.extract_strided_slice %167 {offsets = [0, 0], sizes = [4, 96], strides = [1, 1]} : vector<4x128xf32> to vector<4x96xf32>
    %169 = arith.negf %168 : vector<4x96xf32>
    %170 = math.exp %169 : vector<4x96xf32>
    %cst_65 = arith.constant 1.000000e+00 : f32
    %171 = vector.broadcast %cst_65 : f32 to vector<4x96xf32>
    %172 = arith.addf %171, %170 : vector<4x96xf32>
    %173 = arith.divf %171, %172 : vector<4x96xf32>
    %174 = vector.extract_strided_slice %167 {offsets = [0, 96], sizes = [4, 32], strides = [1, 1]} : vector<4x128xf32> to vector<4x32xf32>
    %175 = math.tanh %174 : vector<4x32xf32>
    %176 = vector.extract_strided_slice %173 {offsets = [0, 0], sizes = [4, 32], strides = [1, 1]} : vector<4x96xf32> to vector<4x32xf32>
    %177 = vector.extract_strided_slice %173 {offsets = [0, 32], sizes = [4, 32], strides = [1, 1]} : vector<4x96xf32> to vector<4x32xf32>
    %178 = vector.extract_strided_slice %173 {offsets = [0, 64], sizes = [4, 32], strides = [1, 1]} : vector<4x96xf32> to vector<4x32xf32>
    %179 = arith.mulf %177, %139 : vector<4x32xf32>
    %180 = arith.mulf %176, %175 : vector<4x32xf32>
    %181 = arith.addf %179, %180 : vector<4x32xf32>
    %182 = math.tanh %181 : vector<4x32xf32>
    %183 = arith.mulf %178, %182 : vector<4x32xf32>
    %c208 = arith.constant 208 : index
    %c0_66 = arith.constant 0 : index
    %184 = vector.load %arg3[%c208, %c0_66] : memref<296x128xf32, #tpu.memory_space<vmem>>, vector<32x128xf32>
    %c138 = arith.constant 138 : index
    %c0_67 = arith.constant 0 : index
    %185 = vector.load %arg3[%c138, %c0_67] : memref<296x128xf32, #tpu.memory_space<vmem>>, vector<1x128xf32>
    %186 = vector.extract_strided_slice %185 {offsets = [0, 0], sizes = [1, 32], strides = [1, 1]} : vector<1x128xf32> to vector<1x32xf32>
    %cst_68 = arith.constant dense<0.000000e+00> : vector<4x128xf32>
    %187 = tpu.matmul %183, %184, %cst_68 {dimension_numbers = #tpu.dot_dimension_numbers<[1], [0], [0], [1], [0, 0, 1, 1], [], []>, precision = #tpu.contract_precision<fp32>} : vector<4x32xf32>, vector<32x128xf32>, vector<4x128xf32> -> vector<4x128xf32>
    %188 = vector.extract_strided_slice %187 {offsets = [0, 0], sizes = [4, 32], strides = [1, 1]} : vector<4x128xf32> to vector<4x32xf32>
    %189 = vector.broadcast %186 : vector<1x32xf32> to vector<4x32xf32>
    %190 = arith.addf %188, %189 : vector<4x32xf32>
    %191 = tpu.concatenate %163, %183, %161, %181 in 1 : vector<4x32xf32>, vector<4x32xf32>, vector<4x32xf32>, vector<4x32xf32> -> vector<4x128xf32>
    %c0_69 = arith.constant 0 : index
    %c0_70 = arith.constant 0 : index
    %192 = vector.load %arg5[%c0_69, %c0_70] : memref<4x128xf32, #tpu.memory_space<vmem>>, vector<4x128xf32>
    tpu.vector_store %arg5[%c0_69, %c0_70], %191 {strides = array<i32>} : memref<4x128xf32, #tpu.memory_space<vmem>>, vector<4x128xf32>,
    %c0_71 = arith.constant 0 : index
    %c0_72 = arith.constant 0 : index
    %193 = vector.load %arg4[%c0_71, %c0_72] : memref<4x32xf32, #tpu.memory_space<vmem>>, vector<4x32xf32>
    tpu.vector_store %arg4[%c0_71, %c0_72], %190 {strides = array<i32>} : memref<4x32xf32, #tpu.memory_space<vmem>>, vector<4x32xf32>,
    return
  }
}

</mosaic_0001>

<llo_original>
// kernel: history_model_forward.1
$region0: #{history_model_forward.1}
  #allocation0 [shape = 'u32[]', space=smem, size = 0x4, offset = 0x4, fixed_abs, tag = 'smem constant byte address 0x4 - core index']
  #allocation1 [shape = 'u32[144,128]{1,0:T(1,128)}', space=vmem, size = 0x12000, scoped, tag = 'internal scratch']
  %s0 = inlined_call_operand.vmem [shape: s32[20], index: 0, kind: input, shape index: {}]
  %s1 = inlined_call_operand.vmem [shape: f32[4,16], index: 1, kind: input, shape index: {}]
  %s2 = inlined_call_operand.vmem [shape: f32[4,128], index: 2, kind: input, shape index: {}, may-alias: {2,5}]
  %s3 = inlined_call_operand.hbm [shape: f32[296,128], index: 3, kind: input, shape index: {}]
  %s4 = inlined_call_operand.hbm [shape: f32[4,32], index: 4, kind: output, shape index: {0}]
  %s5 = inlined_call_operand.vmem [shape: f32[4,128], index: 5, kind: output, shape index: {1}, may-alias: {2,5}]
  %6 = xla_tuple %s4, %s5
  %s7 = sld [smem:[#allocation0]]
  $region42: #{history_model_forward.1} parent=0
    _
  %s9 = ssub.s32 1, %s7
  %s10 = scalar_select 0, %s9, %s7
  $region1: #{history_model_forward.1} parent=0
    #allocation2 [shape = 'u8[512]{0}', space=smem, size = 0x200, scoped, tag = 'input window, operand 0, single buffered']
    #allocation3 [shape = 's32[1]{0}', space=sflag, size = 0x4, scoped, tag = 'scoped memory for history_model_forward.1']
    #allocation4 [shape = 's32[1]{0}', space=sflag, size = 0x4, scoped, tag = 'scoped memory for history_model_forward.1']
    #allocation5 [shape = 's32[1]{0}', space=sflag, size = 0x4, scoped, tag = 'scoped memory for history_model_forward.1']
    #allocation6 [shape = 'u8[151552]{0}', space=vmem, size = 0x25000, scoped, tag = 'input window, operand 3, single buffered']
    #allocation7 [shape = 'u8[2048]{0}', space=vmem, size = 0x800, scoped, tag = 'output window, operand 0, single buffered']
    %11 = vsyncpa [#allocation5], 0
    %12 = vsyncpa [#allocation3], 0
    %13 = vsyncpa [#allocation4], 0
    // Predicated region
    $region2: #{history_model_forward.1} parent=1 // pred_check
      _
    $region3: #{history_model_forward.1} parent=1 // pred_check_branch
      %15 = sbr.rel (0) target = $region5
    $region4: #{history_model_forward.1} parent=1 // pred_region
      %s17 = ssub.s32 16, 16
      %18 = vsyncadd [#allocation5], %s17
      %s20 = sshll.u32 %s0, 4
      %s21 = int_to_ptr.vmem [resolvable:$true] %s20
      %23 = dma.vmem_to_smem %s21, 16, [#allocation2], [#allocation5]
    $region5: #{history_model_forward.1} parent=1 // pred_fallthru
      _
    // Predicated region
    $region6: #{history_model_forward.1} parent=1 // pred_check
      _
    $region7: #{history_model_forward.1} parent=1 // pred_check_branch
      %25 = sbr.rel (0) target = $region9
    $region8: #{history_model_forward.1} parent=1 // pred_region
      _
    $region9: #{history_model_forward.1} parent=1 // pred_fallthru
      _
    // Predicated region
    $region10: #{history_model_forward.1} parent=1 // pred_check
      _
    $region11: #{history_model_forward.1} parent=1 // pred_check_branch
      %27 = sbr.rel (0) target = $region13
    $region12: #{history_model_forward.1} parent=1 // pred_region
      _
    $region13: #{history_model_forward.1} parent=1 // pred_fallthru
      _
    // Predicated region
    $region14: #{history_model_forward.1} parent=1 // pred_check
      _
    $region15: #{history_model_forward.1} parent=1 // pred_check_branch
      %29 = sbr.rel (0) target = $region17
    $region16: #{history_model_forward.1} parent=1 // pred_region
      %s31 = ssub.s32 4736, 4736
      %32 = vsyncadd [#allocation3], %s31
      %s33 = sshll.u32 [#allocation6], 4
      %s34 = int_to_ptr.vmem [resolvable:$true] %s33
      %39 = dma.hbm_to_vmem [thread:$0]  %s3, 4736, %s34, [#allocation3], 128, 128, 8
    $region17: #{history_model_forward.1} parent=1 // pred_fallthru
      _
    // Predicated region
    $region18: #{history_model_forward.1} parent=1 // pred_check
      _
    $region19: #{history_model_forward.1} parent=1 // pred_check_branch
      %41 = sbr.rel (0) target = $region21
    $region20: #{history_model_forward.1} parent=1 // pred_region
      %42 = dma.done [#allocation5], 16
    $region21: #{history_model_forward.1} parent=1 // pred_fallthru
      _
    // Predicated region
    $region22: #{history_model_forward.1} parent=1 // pred_check
      _
    $region23: #{history_model_forward.1} parent=1 // pred_check_branch
      %44 = sbr.rel (0) target = $region25
    $region24: #{history_model_forward.1} parent=1 // pred_region
      %45 = dma.done [#allocation3], 4736
    $region25: #{history_model_forward.1} parent=1 // pred_fallthru
      _
    %46 = sfence
    %s47 = sld [smem:[#allocation2]]
    %s48 = sadd.s32 %s47, 240
    %s49 = scalar_lea.vmem [#allocation6], %s48
    %v50 = vld [vmem:[%s49] sm:$0x1]
    %s51 = sld [smem:[#allocation2 + $0x1]]
    %s52 = sadd.s32 %s51, 240
    %s53 = scalar_lea.vmem [#allocation6], %s52
    %v54 = vld [vmem:[%s53] sm:$0x1]
    %s55 = sld [smem:[#allocation2 + $0x2]]
    %s56 = sadd.s32 %s55, 240
    %s57 = scalar_lea.vmem [#allocation6], %s56
    %v58 = vld [vmem:[%s57] sm:$0x1]
    %s59 = sld [smem:[#allocation2 + $0x3]]
    %s60 = sadd.s32 %s59, 240
    %s61 = scalar_lea.vmem [#allocation6], %s60
    %v62 = vld [vmem:[%s61] sm:$0x1]
    %v63 = vld [vmem:[%s1] sm:$0x1]
    %s64 = sld [smem:[#allocation2 + $0x4]]
    %s65 = sadd.s32 %s64, 240
    %s66 = scalar_lea.vmem [#allocation6], %s65
    %v67 = vld [vmem:[%s66] sm:$0x1]
    %69 = vrot.lane.b32.xlu0 %v54, 16
    %v70 = vpop.permute.xlu0 %69
    %73 = vrot.lane.b32.xlu0 %v58, 32
    %v74 = vpop.permute.xlu0 %73
    %77 = vrot.lane.b32.xlu0 %v62, 48
    %v78 = vpop.permute.xlu0 %77
    %81 = vrot.lane.b32.xlu0 %v63, 64
    %v82 = vpop.permute.xlu0 %81
    %85 = vrot.lane.b32.xlu0 %v67, 80
    %v86 = vpop.permute.xlu0 %85
    %vm88 = vcmask 130048
    %v89 = vsel %vm88, %v50, %v70
    %vm90 = vcmask 261120
    %v91 = vsel %vm90, %v89, %v74
    %vm92 = vcmask 392192
    %v93 = vsel %vm92, %v91, %v78
    %vm94 = vcmask 523264
    %v95 = vsel %vm94, %v93, %v82
    %vm96 = vcmask 654336
    %v97 = vsel %vm96, %v95, %v86
    %s98 = sld [smem:[#allocation2 + $0x5]]
    %s99 = sadd.s32 %s98, 240
    %s100 = scalar_lea.vmem [#allocation6], %s99
    %v101 = vld [vmem:[%s100] sm:$0x1]
    %s102 = sld [smem:[#allocation2 + $0x6]]
    %s103 = sadd.s32 %s102, 240
    %s104 = scalar_lea.vmem [#allocation6], %s103
    %v105 = vld [vmem:[%s104] sm:$0x1]
    %s106 = sld [smem:[#allocation2 + $0x7]]
    %s107 = sadd.s32 %s106, 240
    %s108 = scalar_lea.vmem [#allocation6], %s107
    %v109 = vld [vmem:[%s108] sm:$0x1]
    %s110 = sld [smem:[#allocation2 + $0x8]]
    %s111 = sadd.s32 %s110, 240
    %s112 = scalar_lea.vmem [#allocation6], %s111
    %v113 = vld [vmem:[%s112] sm:$0x1]
    %v114 = vld [vmem:[%s1 + $0x1] sm:$0x1]
    %s115 = sld [smem:[#allocation2 + $0x9]]
    %s116 = sadd.s32 %s115, 240
    %s117 = scalar_lea.vmem [#allocation6], %s116
    %v118 = vld [vmem:[%s117] sm:$0x1]
    %120 = vrot.lane.b32.xlu0 %v105, 16
    %v121 = vpop.permute.xlu0 %120
    %124 = vrot.lane.b32.xlu0 %v109, 32
    %v125 = vpop.permute.xlu0 %124
    %128 = vrot.lane.b32.xlu0 %v113, 48
    %v129 = vpop.permute.xlu0 %128
    %132 = vrot.lane.b32.xlu0 %v114, 64
    %v133 = vpop.permute.xlu0 %132
    %136 = vrot.lane.b32.xlu0 %v118, 80
    %v137 = vpop.permute.xlu0 %136
    %v139 = vsel %vm88, %v101, %v121
    %v140 = vsel %vm90, %v139, %v125
    %v141 = vsel %vm92, %v140, %v129
    %v142 = vsel %vm94, %v141, %v133
    %v143 = vsel %vm96, %v142, %v137
    %s144 = sld [smem:[#allocation2 + $0xa]]
    %s145 = sadd.s32 %s144, 240
    %s146 = scalar_lea.vmem [#allocation6], %s145
    %v147 = vld [vmem:[%s146] sm:$0x1]
    %s148 = sld [smem:[#allocation2 + $0xb]]
    %s149 = sadd.s32 %s148, 240
    %s150 = scalar_lea.vmem [#allocation6], %s149
    %v151 = vld [vmem:[%s150] sm:$0x1]
    %s152 = sld [smem:[#allocation2 + $0xc]]
    %s153 = sadd.s32 %s152, 240
    %s154 = scalar_lea.vmem [#allocation6], %s153
    %v155 = vld [vmem:[%s154] sm:$0x1]
    %s156 = sld [smem:[#allocation2 + $0xd]]
    %s157 = sadd.s32 %s156, 240
    %s158 = scalar_lea.vmem [#allocation6], %s157
    %v159 = vld [vmem:[%s158] sm:$0x1]
    %v160 = vld [vmem:[%s1 + $0x2] sm:$0x1]
    %s161 = sld [smem:[#allocation2 + $0xe]]
    %s162 = sadd.s32 %s161, 240
    %s163 = scalar_lea.vmem [#allocation6], %s162
    %v164 = vld [vmem:[%s163] sm:$0x1]
    %166 = vrot.lane.b32.xlu0 %v151, 16
    %v167 = vpop.permute.xlu0 %166
    %170 = vrot.lane.b32.xlu0 %v155, 32
    %v171 = vpop.permute.xlu0 %170
    %174 = vrot.lane.b32.xlu0 %v159, 48
    %v175 = vpop.permute.xlu0 %174
    %178 = vrot.lane.b32.xlu0 %v160, 64
    %v179 = vpop.permute.xlu0 %178
    %182 = vrot.lane.b32.xlu0 %v164, 80
    %v183 = vpop.permute.xlu0 %182
    %v185 = vsel %vm88, %v147, %v167
    %v186 = vsel %vm90, %v185, %v171
    %v187 = vsel %vm92, %v186, %v175
    %v188 = vsel %vm94, %v187, %v179
    %v189 = vsel %vm96, %v188, %v183
    %s190 = sld [smem:[#allocation2 + $0xf]]
    %s191 = sadd.s32 %s190, 240
    %s192 = scalar_lea.vmem [#allocation6], %s191
    %v193 = vld [vmem:[%s192] sm:$0x1]
    %s194 = sld [smem:[#allocation2 + $0x10]]
    %s195 = sadd.s32 %s194, 240
    %s196 = scalar_lea.vmem [#allocation6], %s195
    %v197 = vld [vmem:[%s196] sm:$0x1]
    %s198 = sld [smem:[#allocation2 + $0x11]]
    %s199 = sadd.s32 %s198, 240
    %s200 = scalar_lea.vmem [#allocation6], %s199
    %v201 = vld [vmem:[%s200] sm:$0x1]
    %s202 = sld [smem:[#allocation2 + $0x12]]
    %s203 = sadd.s32 %s202, 240
    %s204 = scalar_lea.vmem [#allocation6], %s203
    %v205 = vld [vmem:[%s204] sm:$0x1]
    %v206 = vld [vmem:[%s1 + $0x3] sm:$0x1]
    %s207 = sld [smem:[#allocation2 + $0x13]]
    %s208 = sadd.s32 %s207, 240
    %s209 = scalar_lea.vmem [#allocation6], %s208
    %v210 = vld [vmem:[%s209] sm:$0x1]
    %212 = vrot.lane.b32.xlu0 %v197, 16
    %v213 = vpop.permute.xlu0 %212
    %216 = vrot.lane.b32.xlu0 %v201, 32
    %v217 = vpop.permute.xlu0 %216
    %220 = vrot.lane.b32.xlu0 %v205, 48
    %v221 = vpop.permute.xlu0 %220
    %224 = vrot.lane.b32.xlu0 %v206, 64
    %v225 = vpop.permute.xlu0 %224
    %228 = vrot.lane.b32.xlu0 %v210, 80
    %v229 = vpop.permute.xlu0 %228
    %v231 = vsel %vm88, %v193, %v213
    %v232 = vsel %vm90, %v231, %v217
    %v233 = vsel %vm92, %v232, %v221
    %v234 = vsel %vm94, %v233, %v225
    %v235 = vsel %vm96, %v234, %v229
    %v237 = vrot.slane %v143, 7
    %v240 = vrot.slane %v189, 6
    %v243 = vrot.slane %v235, 5
    %vm245 = vcmask 1040384
    %v246 = vsel %vm245, %v97, %v237
    %vm247 = vcmask 1041408
    %v248 = vsel %vm247, %v246, %v240
    %vm249 = vcmask 1042432
    %v250 = vsel %vm249, %v248, %v243
    %v251 = vld [vmem:[#allocation6] sm:$0x1]
    %v252 = vld [vmem:[#allocation6 + $0x1] sm:$0x1]
    %vm253 = vcmask 781312
    %v254 = vsel %vm253, %v250, 0.0
    %255 = vadd.xlane.f32.xlu0 %v254
    %v256 = vpop.xlane.xlu0 %255
    %v257 = vrcp.pop 96.0
    %v258 = vmul.f32 %v256, %v257
    %v259 = vsub.f32 %v250, %v258
    %v260 = vmul.f32 %v259, %v259
    %v261 = vsel %vm253, %v260, 0.0
    %262 = vadd.xlane.f32.xlu0 %v261
    %v263 = vpop.xlane.xlu0 %262
    %v264 = vmul.f32 %v263, %v257
    %v265 = vadd.f32 %v264, 1e-05
    %v266 = vrsqrt.pop %v265
    %v267 = vmul.f32 %v259, %v266
    %v268 = vlaneseq
    %v269 = vshrl.u32 %v268, 7
    %v270 = vsub.s32 0, %v269
    %v271 = vrot.slane %v251, %v270
    %v272 = vmul.f32 %v267, %v271
    %v273 = vlaneseq
    %v274 = vshrl.u32 %v273, 7
    %v275 = vsub.s32 0, %v274
    %v276 = vrot.slane %v252, %v275
    %v277 = vadd.f32 %v272, %v276
    %v278 = vld [vmem:[%s2] sm:$0xf]
    %v279 = vld [vmem:[#allocation6 + $0x8] sm:$0xff]
    %v280 = vld [vmem:[#allocation6 + $0x10] sm:$0xff]
    %v281 = vld [vmem:[#allocation6 + $0x18] sm:$0xff]
    %v282 = vld [vmem:[#allocation6 + $0x20] sm:$0xff]
    %v283 = vld [vmem:[#allocation6 + $0x28] sm:$0xff]
    %v284 = vld [vmem:[#allocation6 + $0x30] sm:$0xff]
    %v285 = vld [vmem:[#allocation6 + $0x38] sm:$0xff]
    %v286 = vld [vmem:[#allocation6 + $0x40] sm:$0xff]
    %v287 = vld [vmem:[#allocation6 + $0x48] sm:$0xff]
    %v288 = vld [vmem:[#allocation6 + $0x50] sm:$0xff]
    %v289 = vld [vmem:[#allocation6 + $0x58] sm:$0xff]
    %v290 = vld [vmem:[#allocation6 + $0x60] sm:$0xff]
    %v291 = vld [vmem:[#allocation6 + $0x68] sm:$0xff]
    %v292 = vld [vmem:[#allocation6 + $0x70] sm:$0xff]
    %v293 = vld [vmem:[#allocation6 + $0x78] sm:$0xff]
    %v294 = vld [vmem:[#allocation6 + $0x80] sm:$0xff]
    %v295 = vld [vmem:[#allocation6 + $0x90] sm:$0xff]
    %v296 = vld [vmem:[#allocation6 + $0x98] sm:$0xff]
    %v297 = vld [vmem:[#allocation6 + $0xa0] sm:$0xff]
    %v298 = vld [vmem:[#allocation6 + $0xa8] sm:$0xff]
    %v299 = vld [vmem:[#allocation6 + $0xb0] sm:$0xff]
    %v300 = vld [vmem:[#allocation6 + $0xb8] sm:$0xff]
    %v301 = vld [vmem:[#allocation6 + $0xc0] sm:$0xff]
    %v302 = vld [vmem:[#allocation6 + $0xc8] sm:$0xff]
    %v303 = vld [vmem:[#allocation6 + $0x88] sm:$0x1]
    %v304 = vld [vmem:[#allocation6 + $0x89] sm:$0x1]
    %306 = vrot.lane.b32.xlu0 %v278, 96
    %v307 = vpop.permute.xlu0 %306
    %vm309 = vcmask 785408
    %v310 = vsel %vm309, %v277, %v307
    %v311 = vlaneseq
    %v312 = vshrl.u32 %v311, 7
    %v313 = vsub.s32 0, %v312
    %v314 = vrot.slane %v303, %v313
    %315 = vmatprep.subr.mxu0 0.0
    %v316 = vand.u32 %v279, 4294901760
    %317 = vmatpush1.msra.mxu0 %v316
    %318 = vmatprep.subr.mxu0 0.0
    %v319 = vand.u32 %v280, 4294901760
    %320 = vmatpush1.msra.mxu0 %v319
    %321 = vmatprep.subr.mxu0 0.0
    %v322 = vand.u32 %v281, 4294901760
    %323 = vmatpush1.msra.mxu0 %v322
    %324 = vmatprep.subr.mxu0 0.0
    %v325 = vand.u32 %v282, 4294901760
    %326 = vmatpush1.msra.mxu0 %v325
    %327 = vmatprep.subr.mxu0 0.0
    %v328 = vand.u32 %v283, 4294901760
    %329 = vmatpush1.msra.mxu0 %v328
    %330 = vmatprep.subr.mxu0 0.0
    %v331 = vand.u32 %v284, 4294901760
    %332 = vmatpush1.msra.mxu0 %v331
    %333 = vmatprep.subr.mxu0 0.0
    %v334 = vand.u32 %v285, 4294901760
    %335 = vmatpush1.msra.mxu0 %v334
    %336 = vmatprep.subr.mxu0 0.0
    %v337 = vand.u32 %v286, 4294901760
    %338 = vmatpush1.msra.mxu0 %v337
    %339 = vmatprep.subr.mxu0 0.0
    %v340 = vand.u32 %v287, 4294901760
    %341 = vmatpush1.msra.mxu0 %v340
    %342 = vmatprep.subr.mxu0 0.0
    %v343 = vand.u32 %v288, 4294901760
    %344 = vmatpush1.msra.mxu0 %v343
    %345 = vmatprep.subr.mxu0 0.0
    %v346 = vand.u32 %v289, 4294901760
    %347 = vmatpush1.msra.mxu0 %v346
    %348 = vmatprep.subr.mxu0 0.0
    %v349 = vand.u32 %v290, 4294901760
    %350 = vmatpush1.msra.mxu0 %v349
    %351 = vmatprep.subr.mxu0 0.0
    %v352 = vand.u32 %v291, 4294901760
    %353 = vmatpush1.msra.mxu0 %v352
    %354 = vmatprep.subr.mxu0 0.0
    %v355 = vand.u32 %v292, 4294901760
    %356 = vmatpush1.msra.mxu0 %v355
    %357 = vmatprep.subr.mxu0 0.0
    %v358 = vand.u32 %v293, 4294901760
    %359 = vmatpush1.msra.mxu0 %v358
    %360 = vmatprep.subr.mxu0 0.0
    %v361 = vand.u32 %v294, 4294901760
    %362 = vmatpush1.msra.mxu0 %v361
    %363 = vmatprep.subr.mxu0 0.0
    %364 = vmatpush1.msra.mxu0 0.0
    %365 = vmatprep.subr.mxu0 0.0
    %366 = vmatpush1.msra.mxu0 0.0
    %367 = vmatprep.subr.mxu0 0.0
    %368 = vmatpush1.msra.mxu0 0.0
    %369 = vmatprep.subr.mxu0 0.0
    %370 = vmatpush1.msra.mxu0 0.0
    %371 = vmatprep.subr.mxu0 0.0
    %372 = vmatpush1.msra.mxu0 0.0
    %373 = vmatprep.subr.mxu0 0.0
    %374 = vmatpush1.msra.mxu0 0.0
    %375 = vmatprep.subr.mxu0 0.0
    %376 = vmatpush1.msra.mxu0 0.0
    %377 = vmatprep.subr.mxu0 0.0
    %378 = vmatpush1.msra.mxu0 0.0
    %379 = vmatprep.subr.mxu0 0.0
    %380 = vmatpush1.msra.mxu0 0.0
    %381 = vmatprep.subr.mxu0 0.0
    %382 = vmatpush1.msra.mxu0 0.0
    %383 = vmatprep.subr.mxu0 0.0
    %384 = vmatpush1.msra.mxu0 0.0
    %385 = vmatprep.subr.mxu0 0.0
    %386 = vmatpush1.msra.mxu0 0.0
    %387 = vmatprep.subr.mxu0 0.0
    %388 = vmatpush1.msra.mxu0 0.0
    %389 = vmatprep.subr.mxu0 0.0
    %390 = vmatpush1.msra.mxu0 0.0
    %391 = vmatprep.subr.mxu0 0.0
    %392 = vmatpush1.msra.mxu0 0.0
    %393 = vmatprep.subr.mxu0 0.0
    %394 = vmatpush1.msra.mxu0 0.0
    %395 = vmatprep.mubr.f32.mxu0 0.0
    %v396 = vand.u32 %v310, 4294901760
    %v397 = vsub.f32 %v310, %v396
    %v398 = vand.u32 %v397, 4294901760
    %v399 = vsub.f32 %v397, %v398
    %v400 = vand.u32 %v399, 4294901760
    %401 = vmatmul.mubr.f32.gmra.mrb[0].mxu0 %v400
    %v402 = vpop.f32.mrb[0].mxu0
    %v403 = vadd.f32 %v314, %v402
    %v404 = vpop.f32.mrb[0].mxu0
    %405 = vdwg.mxu0
    %406 = vmatprep.subr.mxu0 0.0
    %v407 = vand.u32 %v279, 4294901760
    %v408 = vsub.f32 %v279, %v407
    %v409 = vand.u32 %v408, 4294901760
    %v410 = vsub.f32 %v408, %v409
    %v411 = vand.u32 %v410, 4294901760
    %412 = vmatpush1.msra.mxu0 %v411
    %413 = vmatprep.subr.mxu0 0.0
    %v414 = vand.u32 %v280, 4294901760
    %v415 = vsub.f32 %v280, %v414
    %v416 = vand.u32 %v415, 4294901760
    %v417 = vsub.f32 %v415, %v416
    %v418 = vand.u32 %v417, 4294901760
    %419 = vmatpush1.msra.mxu0 %v418
    %420 = vmatprep.subr.mxu0 0.0
    %v421 = vand.u32 %v281, 4294901760
    %v422 = vsub.f32 %v281, %v421
    %v423 = vand.u32 %v422, 4294901760
    %v424 = vsub.f32 %v422, %v423
    %v425 = vand.u32 %v424, 4294901760
    %426 = vmatpush1.msra.mxu0 %v425
    %427 = vmatprep.subr.mxu0 0.0
    %v428 = vand.u32 %v282, 4294901760
    %v429 = vsub.f32 %v282, %v428
    %v430 = vand.u32 %v429, 4294901760
    %v431 = vsub.f32 %v429, %v430
    %v432 = vand.u32 %v431, 4294901760
    %433 = vmatpush1.msra.mxu0 %v432
    %434 = vmatprep.subr.mxu0 0.0
    %v435 = vand.u32 %v283, 4294901760
    %v436 = vsub.f32 %v283, %v435
    %v437 = vand.u32 %v436, 4294901760
    %v438 = vsub.f32 %v436, %v437
    %v439 = vand.u32 %v438, 4294901760
    %440 = vmatpush1.msra.mxu0 %v439
    %441 = vmatprep.subr.mxu0 0.0
    %v442 = vand.u32 %v284, 4294901760
    %v443 = vsub.f32 %v284, %v442
    %v444 = vand.u32 %v443, 4294901760
    %v445 = vsub.f32 %v443, %v444
    %v446 = vand.u32 %v445, 4294901760
    %447 = vmatpush1.msra.mxu0 %v446
    %448 = vmatprep.subr.mxu0 0.0
    %v449 = vand.u32 %v285, 4294901760
    %v450 = vsub.f32 %v285, %v449
    %v451 = vand.u32 %v450, 4294901760
    %v452 = vsub.f32 %v450, %v451
    %v453 = vand.u32 %v452, 4294901760
    %454 = vmatpush1.msra.mxu0 %v453
    %455 = vmatprep.subr.mxu0 0.0
    %v456 = vand.u32 %v286, 4294901760
    %v457 = vsub.f32 %v286, %v456
    %v458 = vand.u32 %v457, 4294901760
    %v459 = vsub.f32 %v457, %v458
    %v460 = vand.u32 %v459, 4294901760
    %461 = vmatpush1.msra.mxu0 %v460
    %462 = vmatprep.subr.mxu0 0.0
    %v463 = vand.u32 %v287, 4294901760
    %v464 = vsub.f32 %v287, %v463
    %v465 = vand.u32 %v464, 4294901760
    %v466 = vsub.f32 %v464, %v465
    %v467 = vand.u32 %v466, 4294901760
    %468 = vmatpush1.msra.mxu0 %v467
    %469 = vmatprep.subr.mxu0 0.0
    %v470 = vand.u32 %v288, 4294901760
    %v471 = vsub.f32 %v288, %v470
    %v472 = vand.u32 %v471, 4294901760
    %v473 = vsub.f32 %v471, %v472
    %v474 = vand.u32 %v473, 4294901760
    %475 = vmatpush1.msra.mxu0 %v474
    %476 = vmatprep.subr.mxu0 0.0
    %v477 = vand.u32 %v289, 4294901760
    %v478 = vsub.f32 %v289, %v477
    %v479 = vand.u32 %v478, 4294901760
    %v480 = vsub.f32 %v478, %v479
    %v481 = vand.u32 %v480, 4294901760
    %482 = vmatpush1.msra.mxu0 %v481
    %483 = vmatprep.subr.mxu0 0.0
    %v484 = vand.u32 %v290, 4294901760
    %v485 = vsub.f32 %v290, %v484
    %v486 = vand.u32 %v485, 4294901760
    %v487 = vsub.f32 %v485, %v486
    %v488 = vand.u32 %v487, 4294901760
    %489 = vmatpush1.msra.mxu0 %v488
    %490 = vmatprep.subr.mxu0 0.0
    %v491 = vand.u32 %v291, 4294901760
    %v492 = vsub.f32 %v291, %v491
    %v493 = vand.u32 %v492, 4294901760
    %v494 = vsub.f32 %v492, %v493
    %v495 = vand.u32 %v494, 4294901760
    %496 = vmatpush1.msra.mxu0 %v495
    %497 = vmatprep.subr.mxu0 0.0
    %v498 = vand.u32 %v292, 4294901760
    %v499 = vsub.f32 %v292, %v498
    %v500 = vand.u32 %v499, 4294901760
    %v501 = vsub.f32 %v499, %v500
    %v502 = vand.u32 %v501, 4294901760
    %503 = vmatpush1.msra.mxu0 %v502
    %504 = vmatprep.subr.mxu0 0.0
    %v505 = vand.u32 %v293, 4294901760
    %v506 = vsub.f32 %v293, %v505
    %v507 = vand.u32 %v506, 4294901760
    %v508 = vsub.f32 %v506, %v507
    %v509 = vand.u32 %v508, 4294901760
    %510 = vmatpush1.msra.mxu0 %v509
    %511 = vmatprep.subr.mxu0 0.0
    %v512 = vand.u32 %v294, 4294901760
    %v513 = vsub.f32 %v294, %v512
    %v514 = vand.u32 %v513, 4294901760
    %v515 = vsub.f32 %v513, %v514
    %v516 = vand.u32 %v515, 4294901760
    %517 = vmatpush1.msra.mxu0 %v516
    %518 = vmatprep.subr.mxu0 0.0
    %519 = vmatpush1.msra.mxu0 0.0
    %520 = vmatprep.subr.mxu0 0.0
    %521 = vmatpush1.msra.mxu0 0.0
    %522 = vmatprep.subr.mxu0 0.0
    %523 = vmatpush1.msra.mxu0 0.0
    %524 = vmatprep.subr.mxu0 0.0
    %525 = vmatpush1.msra.mxu0 0.0
    %526 = vmatprep.subr.mxu0 0.0
    %527 = vmatpush1.msra.mxu0 0.0
    %528 = vmatprep.subr.mxu0 0.0
    %529 = vmatpush1.msra.mxu0 0.0
    %530 = vmatprep.subr.mxu0 0.0
    %531 = vmatpush1.msra.mxu0 0.0
    %532 = vmatprep.subr.mxu0 0.0
    %533 = vmatpush1.msra.mxu0 0.0
    %534 = vmatprep.subr.mxu0 0.0
    %535 = vmatpush1.msra.mxu0 0.0
    %536 = vmatprep.subr.mxu0 0.0
    %537 = vmatpush1.msra.mxu0 0.0
    %538 = vmatprep.subr.mxu0 0.0
    %539 = vmatpush1.msra.mxu0 0.0
    %540 = vmatprep.subr.mxu0 0.0
    %541 = vmatpush1.msra.mxu0 0.0
    %542 = vmatprep.subr.mxu0 0.0
    %543 = vmatpush1.msra.mxu0 0.0
    %544 = vmatprep.subr.mxu0 0.0
    %545 = vmatpush1.msra.mxu0 0.0
    %546 = vmatprep.subr.mxu0 0.0
    %547 = vmatpush1.msra.mxu0 0.0
    %548 = vmatprep.subr.mxu0 0.0
    %549 = vmatpush1.msra.mxu0 0.0
    %550 = vmatprep.mubr.f32.mxu0 0.0
    %v551 = vand.u32 %v310, 4294901760
    %552 = vmatmul.mubr.f32.gmra.mrb[0].mxu0 %v551
    %v553 = vpop.f32.mrb[0].mxu0
    %v554 = vadd.f32 %v403, %v553
    %v555 = vpop.f32.mrb[0].mxu0
    %556 = vdwg.mxu0
    %557 = vmatprep.subr.mxu0 0.0
    %v558 = vand.u32 %v279, 4294901760
    %v559 = vsub.f32 %v279, %v558
    %560 = vmatpush1.msra.mxu0 %v559
    %561 = vmatprep.subr.mxu0 0.0
    %v562 = vand.u32 %v280, 4294901760
    %v563 = vsub.f32 %v280, %v562
    %564 = vmatpush1.msra.mxu0 %v563
    %565 = vmatprep.subr.mxu0 0.0
    %v566 = vand.u32 %v281, 4294901760
    %v567 = vsub.f32 %v281, %v566
    %568 = vmatpush1.msra.mxu0 %v567
    %569 = vmatprep.subr.mxu0 0.0
    %v570 = vand.u32 %v282, 4294901760
    %v571 = vsub.f32 %v282, %v570
    %572 = vmatpush1.msra.mxu0 %v571
    %573 = vmatprep.subr.mxu0 0.0
    %v574 = vand.u32 %v283, 4294901760
    %v575 = vsub.f32 %v283, %v574
    %576 = vmatpush1.msra.mxu0 %v575
    %577 = vmatprep.subr.mxu0 0.0
    %v578 = vand.u32 %v284, 4294901760
    %v579 = vsub.f32 %v284, %v578
    %580 = vmatpush1.msra.mxu0 %v579
    %581 = vmatprep.subr.mxu0 0.0
    %v582 = vand.u32 %v285, 4294901760
    %v583 = vsub.f32 %v285, %v582
    %584 = vmatpush1.msra.mxu0 %v583
    %585 = vmatprep.subr.mxu0 0.0
    %v586 = vand.u32 %v286, 4294901760
    %v587 = vsub.f32 %v286, %v586
    %588 = vmatpush1.msra.mxu0 %v587
    %589 = vmatprep.subr.mxu0 0.0
    %v590 = vand.u32 %v287, 4294901760
    %v591 = vsub.f32 %v287, %v590
    %592 = vmatpush1.msra.mxu0 %v591
    %593 = vmatprep.subr.mxu0 0.0
    %v594 = vand.u32 %v288, 4294901760
    %v595 = vsub.f32 %v288, %v594
    %596 = vmatpush1.msra.mxu0 %v595
    %597 = vmatprep.subr.mxu0 0.0
    %v598 = vand.u32 %v289, 4294901760
    %v599 = vsub.f32 %v289, %v598
    %600 = vmatpush1.msra.mxu0 %v599
    %601 = vmatprep.subr.mxu0 0.0
    %v602 = vand.u32 %v290, 4294901760
    %v603 = vsub.f32 %v290, %v602
    %604 = vmatpush1.msra.mxu0 %v603
    %605 = vmatprep.subr.mxu0 0.0
    %v606 = vand.u32 %v291, 4294901760
    %v607 = vsub.f32 %v291, %v606
    %608 = vmatpush1.msra.mxu0 %v607
    %609 = vmatprep.subr.mxu0 0.0
    %v610 = vand.u32 %v292, 4294901760
    %v611 = vsub.f32 %v292, %v610
    %612 = vmatpush1.msra.mxu0 %v611
    %613 = vmatprep.subr.mxu0 0.0
    %v614 = vand.u32 %v293, 4294901760
    %v615 = vsub.f32 %v293, %v614
    %616 = vmatpush1.msra.mxu0 %v615
    %617 = vmatprep.subr.mxu0 0.0
    %v618 = vand.u32 %v294, 4294901760
    %v619 = vsub.f32 %v294, %v618
    %620 = vmatpush1.msra.mxu0 %v619
    %621 = vmatprep.subr.mxu0 0.0
    %622 = vmatpush1.msra.mxu0 0.0
    %623 = vmatprep.subr.mxu0 0.0
    %624 = vmatpush1.msra.mxu0 0.0
    %625 = vmatprep.subr.mxu0 0.0
    %626 = vmatpush1.msra.mxu0 0.0
    %627 = vmatprep.subr.mxu0 0.0
    %628 = vmatpush1.msra.mxu0 0.0
    %629 = vmatprep.subr.mxu0 0.0
    %630 = vmatpush1.msra.mxu0 0.0
    %631 = vmatprep.subr.mxu0 0.0
    %632 = vmatpush1.msra.mxu0 0.0
    %633 = vmatprep.subr.mxu0 0.0
    %634 = vmatpush1.msra.mxu0 0.0
    %635 = vmatprep.subr.mxu0 0.0
    %636 = vmatpush1.msra.mxu0 0.0
    %637 = vmatprep.subr.mxu0 0.0
    %638 = vmatpush1.msra.mxu0 0.0
    %639 = vmatprep.subr.mxu0 0.0
    %640 = vmatpush1.msra.mxu0 0.0
    %641 = vmatprep.subr.mxu0 0.0
    %642 = vmatpush1.msra.mxu0 0.0
    %643 = vmatprep.subr.mxu0 0.0
    %644 = vmatpush1.msra.mxu0 0.0
    %645 = vmatprep.subr.mxu0 0.0
    %646 = vmatpush1.msra.mxu0 0.0
    %647 = vmatprep.subr.mxu0 0.0
    %648 = vmatpush1.msra.mxu0 0.0
    %649 = vmatprep.subr.mxu0 0.0
    %650 = vmatpush1.msra.mxu0 0.0
    %651 = vmatprep.subr.mxu0 0.0
    %652 = vmatpush1.msra.mxu0 0.0
    %653 = vmatprep.mubr.f32.mxu0 0.0
    %v654 = vand.u32 %v310, 4294901760
    %v655 = vsub.f32 %v310, %v654
    %656 = vmatmul.mubr.f32.gmra.mrb[0].mxu0 %v655
    %v657 = vpop.f32.mrb[0].mxu0
    %v658 = vadd.f32 %v554, %v657
    %v659 = vpop.f32.mrb[0].mxu0
    %660 = vdwg.mxu0
    %661 = vmatprep.subr.mxu0 0.0
    %v662 = vand.u32 %v279, 4294901760
    %663 = vmatpush1.msra.mxu0 %v662
    %664 = vmatprep.subr.mxu0 0.0
    %v665 = vand.u32 %v280, 4294901760
    %666 = vmatpush1.msra.mxu0 %v665
    %667 = vmatprep.subr.mxu0 0.0
    %v668 = vand.u32 %v281, 4294901760
    %669 = vmatpush1.msra.mxu0 %v668
    %670 = vmatprep.subr.mxu0 0.0
    %v671 = vand.u32 %v282, 4294901760
    %672 = vmatpush1.msra.mxu0 %v671
    %673 = vmatprep.subr.mxu0 0.0
    %v674 = vand.u32 %v283, 4294901760
    %675 = vmatpush1.msra.mxu0 %v674
    %676 = vmatprep.subr.mxu0 0.0
    %v677 = vand.u32 %v284, 4294901760
    %678 = vmatpush1.msra.mxu0 %v677
    %679 = vmatprep.subr.mxu0 0.0
    %v680 = vand.u32 %v285, 4294901760
    %681 = vmatpush1.msra.mxu0 %v680
    %682 = vmatprep.subr.mxu0 0.0
    %v683 = vand.u32 %v286, 4294901760
    %684 = vmatpush1.msra.mxu0 %v683
    %685 = vmatprep.subr.mxu0 0.0
    %v686 = vand.u32 %v287, 4294901760
    %687 = vmatpush1.msra.mxu0 %v686
    %688 = vmatprep.subr.mxu0 0.0
    %v689 = vand.u32 %v288, 4294901760
    %690 = vmatpush1.msra.mxu0 %v689
    %691 = vmatprep.subr.mxu0 0.0
    %v692 = vand.u32 %v289, 4294901760
    %693 = vmatpush1.msra.mxu0 %v692
    %694 = vmatprep.subr.mxu0 0.0
    %v695 = vand.u32 %v290, 4294901760
    %696 = vmatpush1.msra.mxu0 %v695
    %697 = vmatprep.subr.mxu0 0.0
    %v698 = vand.u32 %v291, 4294901760
    %699 = vmatpush1.msra.mxu0 %v698
    %700 = vmatprep.subr.mxu0 0.0
    %v701 = vand.u32 %v292, 4294901760
    %702 = vmatpush1.msra.mxu0 %v701
    %703 = vmatprep.subr.mxu0 0.0
    %v704 = vand.u32 %v293, 4294901760
    %705 = vmatpush1.msra.mxu0 %v704
    %706 = vmatprep.subr.mxu0 0.0
    %v707 = vand.u32 %v294, 4294901760
    %708 = vmatpush1.msra.mxu0 %v707
    %709 = vmatprep.subr.mxu0 0.0
    %710 = vmatpush1.msra.mxu0 0.0
    %711 = vmatprep.subr.mxu0 0.0
    %712 = vmatpush1.msra.mxu0 0.0
    %713 = vmatprep.subr.mxu0 0.0
    %714 = vmatpush1.msra.mxu0 0.0
    %715 = vmatprep.subr.mxu0 0.0
    %716 = vmatpush1.msra.mxu0 0.0
    %717 = vmatprep.subr.mxu0 0.0
    %718 = vmatpush1.msra.mxu0 0.0
    %719 = vmatprep.subr.mxu0 0.0
    %720 = vmatpush1.msra.mxu0 0.0
    %721 = vmatprep.subr.mxu0 0.0
    %722 = vmatpush1.msra.mxu0 0.0
    %723 = vmatprep.subr.mxu0 0.0
    %724 = vmatpush1.msra.mxu0 0.0
    %725 = vmatprep.subr.mxu0 0.0
    %726 = vmatpush1.msra.mxu0 0.0
    %727 = vmatprep.subr.mxu0 0.0
    %728 = vmatpush1.msra.mxu0 0.0
    %729 = vmatprep.subr.mxu0 0.0
    %730 = vmatpush1.msra.mxu0 0.0
    %731 = vmatprep.subr.mxu0 0.0
    %732 = vmatpush1.msra.mxu0 0.0
    %733 = vmatprep.subr.mxu0 0.0
    %734 = vmatpush1.msra.mxu0 0.0
    %735 = vmatprep.subr.mxu0 0.0
    %736 = vmatpush1.msra.mxu0 0.0
    %737 = vmatprep.subr.mxu0 0.0
    %738 = vmatpush1.msra.mxu0 0.0
    %739 = vmatprep.subr.mxu0 0.0
    %740 = vmatpush1.msra.mxu0 0.0
    %741 = vmatprep.mubr.f32.mxu0 0.0
    %v742 = vand.u32 %v310, 4294901760
    %v743 = vsub.f32 %v310, %v742
    %v744 = vand.u32 %v743, 4294901760
    %745 = vmatmul.mubr.f32.gmra.mrb[0].mxu0 %v744
    %v746 = vpop.f32.mrb[0].mxu0
    %v747 = vadd.f32 %v658, %v746
    %v748 = vpop.f32.mrb[0].mxu0
    %749 = vdwg.mxu0
    %750 = vmatprep.subr.mxu0 0.0
    %v751 = vand.u32 %v279, 4294901760
    %v752 = vsub.f32 %v279, %v751
    %v753 = vand.u32 %v752, 4294901760
    %754 = vmatpush1.msra.mxu0 %v753
    %755 = vmatprep.subr.mxu0 0.0
    %v756 = vand.u32 %v280, 4294901760
    %v757 = vsub.f32 %v280, %v756
    %v758 = vand.u32 %v757, 4294901760
    %759 = vmatpush1.msra.mxu0 %v758
    %760 = vmatprep.subr.mxu0 0.0
    %v761 = vand.u32 %v281, 4294901760
    %v762 = vsub.f32 %v281, %v761
    %v763 = vand.u32 %v762, 4294901760
    %764 = vmatpush1.msra.mxu0 %v763
    %765 = vmatprep.subr.mxu0 0.0
    %v766 = vand.u32 %v282, 4294901760
    %v767 = vsub.f32 %v282, %v766
    %v768 = vand.u32 %v767, 4294901760
    %769 = vmatpush1.msra.mxu0 %v768
    %770 = vmatprep.subr.mxu0 0.0
    %v771 = vand.u32 %v283, 4294901760
    %v772 = vsub.f32 %v283, %v771
    %v773 = vand.u32 %v772, 4294901760
    %774 = vmatpush1.msra.mxu0 %v773
    %775 = vmatprep.subr.mxu0 0.0
    %v776 = vand.u32 %v284, 4294901760
    %v777 = vsub.f32 %v284, %v776
    %v778 = vand.u32 %v777, 4294901760
    %779 = vmatpush1.msra.mxu0 %v778
    %780 = vmatprep.subr.mxu0 0.0
    %v781 = vand.u32 %v285, 4294901760
    %v782 = vsub.f32 %v285, %v781
    %v783 = vand.u32 %v782, 4294901760
    %784 = vmatpush1.msra.mxu0 %v783
    %785 = vmatprep.subr.mxu0 0.0
    %v786 = vand.u32 %v286, 4294901760
    %v787 = vsub.f32 %v286, %v786
    %v788 = vand.u32 %v787, 4294901760
    %789 = vmatpush1.msra.mxu0 %v788
    %790 = vmatprep.subr.mxu0 0.0
    %v791 = vand.u32 %v287, 4294901760
    %v792 = vsub.f32 %v287, %v791
    %v793 = vand.u32 %v792, 4294901760
    %794 = vmatpush1.msra.mxu0 %v793
    %795 = vmatprep.subr.mxu0 0.0
    %v796 = vand.u32 %v288, 4294901760
    %v797 = vsub.f32 %v288, %v796
    %v798 = vand.u32 %v797, 4294901760
    %799 = vmatpush1.msra.mxu0 %v798
    %800 = vmatprep.subr.mxu0 0.0
    %v801 = vand.u32 %v289, 4294901760
    %v802 = vsub.f32 %v289, %v801
    %v803 = vand.u32 %v802, 4294901760
    %804 = vmatpush1.msra.mxu0 %v803
    %805 = vmatprep.subr.mxu0 0.0
    %v806 = vand.u32 %v290, 4294901760
    %v807 = vsub.f32 %v290, %v806
    %v808 = vand.u32 %v807, 4294901760
    %809 = vmatpush1.msra.mxu0 %v808
    %810 = vmatprep.subr.mxu0 0.0
    %v811 = vand.u32 %v291, 4294901760
    %v812 = vsub.f32 %v291, %v811
    %v813 = vand.u32 %v812, 4294901760
    %814 = vmatpush1.msra.mxu0 %v813
    %815 = vmatprep.subr.mxu0 0.0
    %v816 = vand.u32 %v292, 4294901760
    %v817 = vsub.f32 %v292, %v816
    %v818 = vand.u32 %v817, 4294901760
    %819 = vmatpush1.msra.mxu0 %v818
    %820 = vmatprep.subr.mxu0 0.0
    %v821 = vand.u32 %v293, 4294901760
    %v822 = vsub.f32 %v293, %v821
    %v823 = vand.u32 %v822, 4294901760
    %824 = vmatpush1.msra.mxu0 %v823
    %825 = vmatprep.subr.mxu0 0.0
    %v826 = vand.u32 %v294, 4294901760
    %v827 = vsub.f32 %v294, %v826
    %v828 = vand.u32 %v827, 4294901760
    %829 = vmatpush1.msra.mxu0 %v828
    %830 = vmatprep.subr.mxu0 0.0
    %831 = vmatpush1.msra.mxu0 0.0
    %832 = vmatprep.subr.mxu0 0.0
    %833 = vmatpush1.msra.mxu0 0.0
    %834 = vmatprep.subr.mxu0 0.0
    %835 = vmatpush1.msra.mxu0 0.0
    %836 = vmatprep.subr.mxu0 0.0
    %837 = vmatpush1.msra.mxu0 0.0
    %838 = vmatprep.subr.mxu0 0.0
    %839 = vmatpush1.msra.mxu0 0.0
    %840 = vmatprep.subr.mxu0 0.0
    %841 = vmatpush1.msra.mxu0 0.0
    %842 = vmatprep.subr.mxu0 0.0
    %843 = vmatpush1.msra.mxu0 0.0
    %844 = vmatprep.subr.mxu0 0.0
    %845 = vmatpush1.msra.mxu0 0.0
    %846 = vmatprep.subr.mxu0 0.0
    %847 = vmatpush1.msra.mxu0 0.0
    %848 = vmatprep.subr.mxu0 0.0
    %849 = vmatpush1.msra.mxu0 0.0
    %850 = vmatprep.subr.mxu0 0.0
    %851 = vmatpush1.msra.mxu0 0.0
    %852 = vmatprep.subr.mxu0 0.0
    %853 = vmatpush1.msra.mxu0 0.0
    %854 = vmatprep.subr.mxu0 0.0
    %855 = vmatpush1.msra.mxu0 0.0
    %856 = vmatprep.subr.mxu0 0.0
    %857 = vmatpush1.msra.mxu0 0.0
    %858 = vmatprep.subr.mxu0 0.0
    %859 = vmatpush1.msra.mxu0 0.0
    %860 = vmatprep.subr.mxu0 0.0
    %861 = vmatpush1.msra.mxu0 0.0
    %862 = vmatprep.mubr.f32.mxu0 0.0
    %v863 = vand.u32 %v310, 4294901760
    %864 = vmatmul.mubr.f32.gmra.mrb[0].mxu0 %v863
    %v865 = vpop.f32.mrb[0].mxu0
    %v866 = vadd.f32 %v747, %v865
    %v867 = vpop.f32.mrb[0].mxu0
    %868 = vdwg.mxu0
    %869 = vmatprep.subr.mxu0 0.0
    %v870 = vand.u32 %v279, 4294901760
    %871 = vmatpush1.msra.mxu0 %v870
    %872 = vmatprep.subr.mxu0 0.0
    %v873 = vand.u32 %v280, 4294901760
    %874 = vmatpush1.msra.mxu0 %v873
    %875 = vmatprep.subr.mxu0 0.0
    %v876 = vand.u32 %v281, 4294901760
    %877 = vmatpush1.msra.mxu0 %v876
    %878 = vmatprep.subr.mxu0 0.0
    %v879 = vand.u32 %v282, 4294901760
    %880 = vmatpush1.msra.mxu0 %v879
    %881 = vmatprep.subr.mxu0 0.0
    %v882 = vand.u32 %v283, 4294901760
    %883 = vmatpush1.msra.mxu0 %v882
    %884 = vmatprep.subr.mxu0 0.0
    %v885 = vand.u32 %v284, 4294901760
    %886 = vmatpush1.msra.mxu0 %v885
    %887 = vmatprep.subr.mxu0 0.0
    %v888 = vand.u32 %v285, 4294901760
    %889 = vmatpush1.msra.mxu0 %v888
    %890 = vmatprep.subr.mxu0 0.0
    %v891 = vand.u32 %v286, 4294901760
    %892 = vmatpush1.msra.mxu0 %v891
    %893 = vmatprep.subr.mxu0 0.0
    %v894 = vand.u32 %v287, 4294901760
    %895 = vmatpush1.msra.mxu0 %v894
    %896 = vmatprep.subr.mxu0 0.0
    %v897 = vand.u32 %v288, 4294901760
    %898 = vmatpush1.msra.mxu0 %v897
    %899 = vmatprep.subr.mxu0 0.0
    %v900 = vand.u32 %v289, 4294901760
    %901 = vmatpush1.msra.mxu0 %v900
    %902 = vmatprep.subr.mxu0 0.0
    %v903 = vand.u32 %v290, 4294901760
    %904 = vmatpush1.msra.mxu0 %v903
    %905 = vmatprep.subr.mxu0 0.0
    %v906 = vand.u32 %v291, 4294901760
    %907 = vmatpush1.msra.mxu0 %v906
    %908 = vmatprep.subr.mxu0 0.0
    %v909 = vand.u32 %v292, 4294901760
    %910 = vmatpush1.msra.mxu0 %v909
    %911 = vmatprep.subr.mxu0 0.0
    %v912 = vand.u32 %v293, 4294901760
    %913 = vmatpush1.msra.mxu0 %v912
    %914 = vmatprep.subr.mxu0 0.0
    %v915 = vand.u32 %v294, 4294901760
    %916 = vmatpush1.msra.mxu0 %v915
    %917 = vmatprep.subr.mxu0 0.0
    %918 = vmatpush1.msra.mxu0 0.0
    %919 = vmatprep.subr.mxu0 0.0
    %920 = vmatpush1.msra.mxu0 0.0
    %921 = vmatprep.subr.mxu0 0.0
    %922 = vmatpush1.msra.mxu0 0.0
    %923 = vmatprep.subr.mxu0 0.0
    %924 = vmatpush1.msra.mxu0 0.0
    %925 = vmatprep.subr.mxu0 0.0
    %926 = vmatpush1.msra.mxu0 0.0
    %927 = vmatprep.subr.mxu0 0.0
    %928 = vmatpush1.msra.mxu0 0.0
    %929 = vmatprep.subr.mxu0 0.0
    %930 = vmatpush1.msra.mxu0 0.0
    %931 = vmatprep.subr.mxu0 0.0
    %932 = vmatpush1.msra.mxu0 0.0
    %933 = vmatprep.subr.mxu0 0.0
    %934 = vmatpush1.msra.mxu0 0.0
    %935 = vmatprep.subr.mxu0 0.0
    %936 = vmatpush1.msra.mxu0 0.0
    %937 = vmatprep.subr.mxu0 0.0
    %938 = vmatpush1.msra.mxu0 0.0
    %939 = vmatprep.subr.mxu0 0.0
    %940 = vmatpush1.msra.mxu0 0.0
    %941 = vmatprep.subr.mxu0 0.0
    %942 = vmatpush1.msra.mxu0 0.0
    %943 = vmatprep.subr.mxu0 0.0
    %944 = vmatpush1.msra.mxu0 0.0
    %945 = vmatprep.subr.mxu0 0.0
    %946 = vmatpush1.msra.mxu0 0.0
    %947 = vmatprep.subr.mxu0 0.0
    %948 = vmatpush1.msra.mxu0 0.0
    %949 = vmatprep.mubr.f32.mxu0 0.0
    %v950 = vand.u32 %v310, 4294901760
    %951 = vmatmul.mubr.f32.gmra.mrb[0].mxu0 %v950
    %v952 = vpop.f32.mrb[0].mxu0
    %v953 = vadd.f32 %v866, %v952
    %v954 = vpop.f32.mrb[0].mxu0
    %955 = vdwg.mxu0
    %v956 = vxor.u32 %v953, 2147483648
    %v957 = vmul.f32 %v956, 1.442695
    %v958 = vpow.pop %v957
    %v959 = vadd.f32 %v958, 1.0
    %v960 = vrcp.pop %v959
    %v961 = vmul.f32 1.0, %v960
    %v962 = vtanh.pop %v953
    %v963 = vmul.f32 %v961, %v307
    %965 = vrot.lane.b32.xlu0 %v962, 32
    %v966 = vpop.permute.xlu0 %965
    %v968 = vmul.f32 %v961, %v966
    %970 = vrot.lane.b32.xlu0 %v968, 32
    %v971 = vpop.permute.xlu0 %970
    %v973 = vadd.f32 %v963, %v971
    %v974 = vtanh.pop %v973
    %976 = vrot.lane.b32.xlu0 %v974, 32
    %v977 = vpop.permute.xlu0 %976
    %v979 = vmul.f32 %v961, %v977
    %981 = vrot.lane.b32.xlu0 %v979, 64
    %v982 = vpop.permute.xlu0 %981
    %v984 = vsel %vm90, %v982, %v278
    %v985 = vlaneseq
    %v986 = vshrl.u32 %v985, 7
    %v987 = vsub.s32 0, %v986
    %v988 = vrot.slane %v304, %v987
    %v990 = vsel %vm94, %v984, 0
    %992 = vmatprep.subr.mxu0 0.0
    %v993 = vand.u32 %v295, 4294901760
    %994 = vmatpush1.msra.mxu0 %v993
    %995 = vmatprep.subr.mxu0 0.0
    %v996 = vand.u32 %v296, 4294901760
    %997 = vmatpush1.msra.mxu0 %v996
    %998 = vmatprep.subr.mxu0 0.0
    %v999 = vand.u32 %v297, 4294901760
    %1000 = vmatpush1.msra.mxu0 %v999
    %1001 = vmatprep.subr.mxu0 0.0
    %v1002 = vand.u32 %v298, 4294901760
    %1003 = vmatpush1.msra.mxu0 %v1002
    %1004 = vmatprep.subr.mxu0 0.0
    %v1005 = vand.u32 %v299, 4294901760
    %1006 = vmatpush1.msra.mxu0 %v1005
    %1007 = vmatprep.subr.mxu0 0.0
    %v1008 = vand.u32 %v300, 4294901760
    %1009 = vmatpush1.msra.mxu0 %v1008
    %1010 = vmatprep.subr.mxu0 0.0
    %v1011 = vand.u32 %v301, 4294901760
    %1012 = vmatpush1.msra.mxu0 %v1011
    %1013 = vmatprep.subr.mxu0 0.0
    %v1014 = vand.u32 %v302, 4294901760
    %1015 = vmatpush1.msra.mxu0 %v1014
    %1016 = vmatprep.subr.mxu0 0.0
    %1017 = vmatpush1.msra.mxu0 0.0
    %1018 = vmatprep.subr.mxu0 0.0
    %1019 = vmatpush1.msra.mxu0 0.0
    %1020 = vmatprep.subr.mxu0 0.0
    %1021 = vmatpush1.msra.mxu0 0.0
    %1022 = vmatprep.subr.mxu0 0.0
    %1023 = vmatpush1.msra.mxu0 0.0
    %1024 = vmatprep.subr.mxu0 0.0
    %1025 = vmatpush1.msra.mxu0 0.0
    %1026 = vmatprep.subr.mxu0 0.0
    %1027 = vmatpush1.msra.mxu0 0.0
    %1028 = vmatprep.subr.mxu0 0.0
    %1029 = vmatpush1.msra.mxu0 0.0
    %1030 = vmatprep.subr.mxu0 0.0
    %1031 = vmatpush1.msra.mxu0 0.0
    %1032 = vmatprep.subr.mxu0 0.0
    %1033 = vmatpush1.msra.mxu0 0.0
    %1034 = vmatprep.subr.mxu0 0.0
    %1035 = vmatpush1.msra.mxu0 0.0
    %1036 = vmatprep.subr.mxu0 0.0
    %1037 = vmatpush1.msra.mxu0 0.0
    %1038 = vmatprep.subr.mxu0 0.0
    %1039 = vmatpush1.msra.mxu0 0.0
    %1040 = vmatprep.subr.mxu0 0.0
    %1041 = vmatpush1.msra.mxu0 0.0
    %1042 = vmatprep.subr.mxu0 0.0
    %1043 = vmatpush1.msra.mxu0 0.0
    %1044 = vmatprep.subr.mxu0 0.0
    %1045 = vmatpush1.msra.mxu0 0.0
    %1046 = vmatprep.subr.mxu0 0.0
    %1047 = vmatpush1.msra.mxu0 0.0
    %1048 = vmatprep.subr.mxu0 0.0
    %1049 = vmatpush1.msra.mxu0 0.0
    %1050 = vmatprep.subr.mxu0 0.0
    %1051 = vmatpush1.msra.mxu0 0.0
    %1052 = vmatprep.subr.mxu0 0.0
    %1053 = vmatpush1.msra.mxu0 0.0
    %1054 = vmatprep.subr.mxu0 0.0
    %1055 = vmatpush1.msra.mxu0 0.0
    %1056 = vmatprep.subr.mxu0 0.0
    %1057 = vmatpush1.msra.mxu0 0.0
    %1058 = vmatprep.subr.mxu0 0.0
    %1059 = vmatpush1.msra.mxu0 0.0
    %1060 = vmatprep.subr.mxu0 0.0
    %1061 = vmatpush1.msra.mxu0 0.0
    %1062 = vmatprep.subr.mxu0 0.0
    %1063 = vmatpush1.msra.mxu0 0.0
    %1064 = vmatprep.mubr.f32.mxu0 0.0
    %v1065 = vand.u32 %v990, 4294901760
    %v1066 = vsub.f32 %v990, %v1065
    %v1067 = vand.u32 %v1066, 4294901760
    %v1068 = vsub.f32 %v1066, %v1067
    %v1069 = vand.u32 %v1068, 4294901760
    %1070 = vmatmul.mubr.f32.gmra.mrb[0].mxu0 %v1069
    %v1071 = vpop.f32.mrb[0].mxu0
    %v1072 = vadd.f32 %v988, %v1071
    %v1073 = vpop.f32.mrb[0].mxu0
    %1074 = vdwg.mxu0
    %1075 = vmatprep.subr.mxu0 0.0
    %v1076 = vand.u32 %v295, 4294901760
    %v1077 = vsub.f32 %v295, %v1076
    %v1078 = vand.u32 %v1077, 4294901760
    %v1079 = vsub.f32 %v1077, %v1078
    %v1080 = vand.u32 %v1079, 4294901760
    %1081 = vmatpush1.msra.mxu0 %v1080
    %1082 = vmatprep.subr.mxu0 0.0
    %v1083 = vand.u32 %v296, 4294901760
    %v1084 = vsub.f32 %v296, %v1083
    %v1085 = vand.u32 %v1084, 4294901760
    %v1086 = vsub.f32 %v1084, %v1085
    %v1087 = vand.u32 %v1086, 4294901760
    %1088 = vmatpush1.msra.mxu0 %v1087
    %1089 = vmatprep.subr.mxu0 0.0
    %v1090 = vand.u32 %v297, 4294901760
    %v1091 = vsub.f32 %v297, %v1090
    %v1092 = vand.u32 %v1091, 4294901760
    %v1093 = vsub.f32 %v1091, %v1092
    %v1094 = vand.u32 %v1093, 4294901760
    %1095 = vmatpush1.msra.mxu0 %v1094
    %1096 = vmatprep.subr.mxu0 0.0
    %v1097 = vand.u32 %v298, 4294901760
    %v1098 = vsub.f32 %v298, %v1097
    %v1099 = vand.u32 %v1098, 4294901760
    %v1100 = vsub.f32 %v1098, %v1099
    %v1101 = vand.u32 %v1100, 4294901760
    %1102 = vmatpush1.msra.mxu0 %v1101
    %1103 = vmatprep.subr.mxu0 0.0
    %v1104 = vand.u32 %v299, 4294901760
    %v1105 = vsub.f32 %v299, %v1104
    %v1106 = vand.u32 %v1105, 4294901760
    %v1107 = vsub.f32 %v1105, %v1106
    %v1108 = vand.u32 %v1107, 4294901760
    %1109 = vmatpush1.msra.mxu0 %v1108
    %1110 = vmatprep.subr.mxu0 0.0
    %v1111 = vand.u32 %v300, 4294901760
    %v1112 = vsub.f32 %v300, %v1111
    %v1113 = vand.u32 %v1112, 4294901760
    %v1114 = vsub.f32 %v1112, %v1113
    %v1115 = vand.u32 %v1114, 4294901760
    %1116 = vmatpush1.msra.mxu0 %v1115
    %1117 = vmatprep.subr.mxu0 0.0
    %v1118 = vand.u32 %v301, 4294901760
    %v1119 = vsub.f32 %v301, %v1118
    %v1120 = vand.u32 %v1119, 4294901760
    %v1121 = vsub.f32 %v1119, %v1120
    %v1122 = vand.u32 %v1121, 4294901760
    %1123 = vmatpush1.msra.mxu0 %v1122
    %1124 = vmatprep.subr.mxu0 0.0
    %v1125 = vand.u32 %v302, 4294901760
    %v1126 = vsub.f32 %v302, %v1125
    %v1127 = vand.u32 %v1126, 4294901760
    %v1128 = vsub.f32 %v1126, %v1127
    %v1129 = vand.u32 %v1128, 4294901760
    %1130 = vmatpush1.msra.mxu0 %v1129
    %1131 = vmatprep.subr.mxu0 0.0
    %1132 = vmatpush1.msra.mxu0 0.0
    %1133 = vmatprep.subr.mxu0 0.0
    %1134 = vmatpush1.msra.mxu0 0.0
    %1135 = vmatprep.subr.mxu0 0.0
    %1136 = vmatpush1.msra.mxu0 0.0
    %1137 = vmatprep.subr.mxu0 0.0
    %1138 = vmatpush1.msra.mxu0 0.0
    %1139 = vmatprep.subr.mxu0 0.0
    %1140 = vmatpush1.msra.mxu0 0.0
    %1141 = vmatprep.subr.mxu0 0.0
    %1142 = vmatpush1.msra.mxu0 0.0
    %1143 = vmatprep.subr.mxu0 0.0
    %1144 = vmatpush1.msra.mxu0 0.0
    %1145 = vmatprep.subr.mxu0 0.0
    %1146 = vmatpush1.msra.mxu0 0.0
    %1147 = vmatprep.subr.mxu0 0.0
    %1148 = vmatpush1.msra.mxu0 0.0
    %1149 = vmatprep.subr.mxu0 0.0
    %1150 = vmatpush1.msra.mxu0 0.0
    %1151 = vmatprep.subr.mxu0 0.0
    %1152 = vmatpush1.msra.mxu0 0.0
    %1153 = vmatprep.subr.mxu0 0.0
    %1154 = vmatpush1.msra.mxu0 0.0
    %1155 = vmatprep.subr.mxu0 0.0
    %1156 = vmatpush1.msra.mxu0 0.0
    %1157 = vmatprep.subr.mxu0 0.0
    %1158 = vmatpush1.msra.mxu0 0.0
    %1159 = vmatprep.subr.mxu0 0.0
    %1160 = vmatpush1.msra.mxu0 0.0
    %1161 = vmatprep.subr.mxu0 0.0
    %1162 = vmatpush1.msra.mxu0 0.0
    %1163 = vmatprep.subr.mxu0 0.0
    %1164 = vmatpush1.msra.mxu0 0.0
    %1165 = vmatprep.subr.mxu0 0.0
    %1166 = vmatpush1.msra.mxu0 0.0
    %1167 = vmatprep.subr.mxu0 0.0
    %1168 = vmatpush1.msra.mxu0 0.0
    %1169 = vmatprep.subr.mxu0 0.0
    %1170 = vmatpush1.msra.mxu0 0.0
    %1171 = vmatprep.subr.mxu0 0.0
    %1172 = vmatpush1.msra.mxu0 0.0
    %1173 = vmatprep.subr.mxu0 0.0
    %1174 = vmatpush1.msra.mxu0 0.0
    %1175 = vmatprep.subr.mxu0 0.0
    %1176 = vmatpush1.msra.mxu0 0.0
    %1177 = vmatprep.subr.mxu0 0.0
    %1178 = vmatpush1.msra.mxu0 0.0
    %1179 = vmatprep.mubr.f32.mxu0 0.0
    %v1180 = vand.u32 %v990, 4294901760
    %1181 = vmatmul.mubr.f32.gmra.mrb[0].mxu0 %v1180
    %v1182 = vpop.f32.mrb[0].mxu0
    %v1183 = vadd.f32 %v1072, %v1182
    %v1184 = vpop.f32.mrb[0].mxu0
    %1185 = vdwg.mxu0
    %1186 = vmatprep.subr.mxu0 0.0
    %v1187 = vand.u32 %v295, 4294901760
    %v1188 = vsub.f32 %v295, %v1187
    %1189 = vmatpush1.msra.mxu0 %v1188
    %1190 = vmatprep.subr.mxu0 0.0
    %v1191 = vand.u32 %v296, 4294901760
    %v1192 = vsub.f32 %v296, %v1191
    %1193 = vmatpush1.msra.mxu0 %v1192
    %1194 = vmatprep.subr.mxu0 0.0
    %v1195 = vand.u32 %v297, 4294901760
    %v1196 = vsub.f32 %v297, %v1195
    %1197 = vmatpush1.msra.mxu0 %v1196
    %1198 = vmatprep.subr.mxu0 0.0
    %v1199 = vand.u32 %v298, 4294901760
    %v1200 = vsub.f32 %v298, %v1199
    %1201 = vmatpush1.msra.mxu0 %v1200
    %1202 = vmatprep.subr.mxu0 0.0
    %v1203 = vand.u32 %v299, 4294901760
    %v1204 = vsub.f32 %v299, %v1203
    %1205 = vmatpush1.msra.mxu0 %v1204
    %1206 = vmatprep.subr.mxu0 0.0
    %v1207 = vand.u32 %v300, 4294901760
    %v1208 = vsub.f32 %v300, %v1207
    %1209 = vmatpush1.msra.mxu0 %v1208
    %1210 = vmatprep.subr.mxu0 0.0
    %v1211 = vand.u32 %v301, 4294901760
    %v1212 = vsub.f32 %v301, %v1211
    %1213 = vmatpush1.msra.mxu0 %v1212
    %1214 = vmatprep.subr.mxu0 0.0
    %v1215 = vand.u32 %v302, 4294901760
    %v1216 = vsub.f32 %v302, %v1215
    %1217 = vmatpush1.msra.mxu0 %v1216
    %1218 = vmatprep.subr.mxu0 0.0
    %1219 = vmatpush1.msra.mxu0 0.0
    %1220 = vmatprep.subr.mxu0 0.0
    %1221 = vmatpush1.msra.mxu0 0.0
    %1222 = vmatprep.subr.mxu0 0.0
    %1223 = vmatpush1.msra.mxu0 0.0
    %1224 = vmatprep.subr.mxu0 0.0
    %1225 = vmatpush1.msra.mxu0 0.0
    %1226 = vmatprep.subr.mxu0 0.0
    %1227 = vmatpush1.msra.mxu0 0.0
    %1228 = vmatprep.subr.mxu0 0.0
    %1229 = vmatpush1.msra.mxu0 0.0
    %1230 = vmatprep.subr.mxu0 0.0
    %1231 = vmatpush1.msra.mxu0 0.0
    %1232 = vmatprep.subr.mxu0 0.0
    %1233 = vmatpush1.msra.mxu0 0.0
    %1234 = vmatprep.subr.mxu0 0.0
    %1235 = vmatpush1.msra.mxu0 0.0
    %1236 = vmatprep.subr.mxu0 0.0
    %1237 = vmatpush1.msra.mxu0 0.0
    %1238 = vmatprep.subr.mxu0 0.0
    %1239 = vmatpush1.msra.mxu0 0.0
    %1240 = vmatprep.subr.mxu0 0.0
    %1241 = vmatpush1.msra.mxu0 0.0
    %1242 = vmatprep.subr.mxu0 0.0
    %1243 = vmatpush1.msra.mxu0 0.0
    %1244 = vmatprep.subr.mxu0 0.0
    %1245 = vmatpush1.msra.mxu0 0.0
    %1246 = vmatprep.subr.mxu0 0.0
    %1247 = vmatpush1.msra.mxu0 0.0
    %1248 = vmatprep.subr.mxu0 0.0
    %1249 = vmatpush1.msra.mxu0 0.0
    %1250 = vmatprep.subr.mxu0 0.0
    %1251 = vmatpush1.msra.mxu0 0.0
    %1252 = vmatprep.subr.mxu0 0.0
    %1253 = vmatpush1.msra.mxu0 0.0
    %1254 = vmatprep.subr.mxu0 0.0
    %1255 = vmatpush1.msra.mxu0 0.0
    %1256 = vmatprep.subr.mxu0 0.0
    %1257 = vmatpush1.msra.mxu0 0.0
    %1258 = vmatprep.subr.mxu0 0.0
    %1259 = vmatpush1.msra.mxu0 0.0
    %1260 = vmatprep.subr.mxu0 0.0
    %1261 = vmatpush1.msra.mxu0 0.0
    %1262 = vmatprep.subr.mxu0 0.0
    %1263 = vmatpush1.msra.mxu0 0.0
    %1264 = vmatprep.subr.mxu0 0.0
    %1265 = vmatpush1.msra.mxu0 0.0
    %1266 = vmatprep.mubr.f32.mxu0 0.0
    %v1267 = vand.u32 %v990, 4294901760
    %v1268 = vsub.f32 %v990, %v1267
    %1269 = vmatmul.mubr.f32.gmra.mrb[0].mxu0 %v1268
    %v1270 = vpop.f32.mrb[0].mxu0
    %v1271 = vadd.f32 %v1183, %v1270
    %v1272 = vpop.f32.mrb[0].mxu0
    %1273 = vdwg.mxu0
    %1274 = vmatprep.subr.mxu0 0.0
    %v1275 = vand.u32 %v295, 4294901760
    %1276 = vmatpush1.msra.mxu0 %v1275
    %1277 = vmatprep.subr.mxu0 0.0
    %v1278 = vand.u32 %v296, 4294901760
    %1279 = vmatpush1.msra.mxu0 %v1278
    %1280 = vmatprep.subr.mxu0 0.0
    %v1281 = vand.u32 %v297, 4294901760
    %1282 = vmatpush1.msra.mxu0 %v1281
    %1283 = vmatprep.subr.mxu0 0.0
    %v1284 = vand.u32 %v298, 4294901760
    %1285 = vmatpush1.msra.mxu0 %v1284
    %1286 = vmatprep.subr.mxu0 0.0
    %v1287 = vand.u32 %v299, 4294901760
    %1288 = vmatpush1.msra.mxu0 %v1287
    %1289 = vmatprep.subr.mxu0 0.0
    %v1290 = vand.u32 %v300, 4294901760
    %1291 = vmatpush1.msra.mxu0 %v1290
    %1292 = vmatprep.subr.mxu0 0.0
    %v1293 = vand.u32 %v301, 4294901760
    %1294 = vmatpush1.msra.mxu0 %v1293
    %1295 = vmatprep.subr.mxu0 0.0
    %v1296 = vand.u32 %v302, 4294901760
    %1297 = vmatpush1.msra.mxu0 %v1296
    %1298 = vmatprep.subr.mxu0 0.0
    %1299 = vmatpush1.msra.mxu0 0.0
    %1300 = vmatprep.subr.mxu0 0.0
    %1301 = vmatpush1.msra.mxu0 0.0
    %1302 = vmatprep.subr.mxu0 0.0
    %1303 = vmatpush1.msra.mxu0 0.0
    %1304 = vmatprep.subr.mxu0 0.0
    %1305 = vmatpush1.msra.mxu0 0.0
    %1306 = vmatprep.subr.mxu0 0.0
    %1307 = vmatpush1.msra.mxu0 0.0
    %1308 = vmatprep.subr.mxu0 0.0
    %1309 = vmatpush1.msra.mxu0 0.0
    %1310 = vmatprep.subr.mxu0 0.0
    %1311 = vmatpush1.msra.mxu0 0.0
    %1312 = vmatprep.subr.mxu0 0.0
    %1313 = vmatpush1.msra.mxu0 0.0
    %1314 = vmatprep.subr.mxu0 0.0
    %1315 = vmatpush1.msra.mxu0 0.0
    %1316 = vmatprep.subr.mxu0 0.0
    %1317 = vmatpush1.msra.mxu0 0.0
    %1318 = vmatprep.subr.mxu0 0.0
    %1319 = vmatpush1.msra.mxu0 0.0
    %1320 = vmatprep.subr.mxu0 0.0
    %1321 = vmatpush1.msra.mxu0 0.0
    %1322 = vmatprep.subr.mxu0 0.0
    %1323 = vmatpush1.msra.mxu0 0.0
    %1324 = vmatprep.subr.mxu0 0.0
    %1325 = vmatpush1.msra.mxu0 0.0
    %1326 = vmatprep.subr.mxu0 0.0
    %1327 = vmatpush1.msra.mxu0 0.0
    %1328 = vmatprep.subr.mxu0 0.0
    %1329 = vmatpush1.msra.mxu0 0.0
    %1330 = vmatprep.subr.mxu0 0.0
    %1331 = vmatpush1.msra.mxu0 0.0
    %1332 = vmatprep.subr.mxu0 0.0
    %1333 = vmatpush1.msra.mxu0 0.0
    %1334 = vmatprep.subr.mxu0 0.0
    %1335 = vmatpush1.msra.mxu0 0.0
    %1336 = vmatprep.subr.mxu0 0.0
    %1337 = vmatpush1.msra.mxu0 0.0
    %1338 = vmatprep.subr.mxu0 0.0
    %1339 = vmatpush1.msra.mxu0 0.0
    %1340 = vmatprep.subr.mxu0 0.0
    %1341 = vmatpush1.msra.mxu0 0.0
    %1342 = vmatprep.subr.mxu0 0.0
    %1343 = vmatpush1.msra.mxu0 0.0
    %1344 = vmatprep.subr.mxu0 0.0
    %1345 = vmatpush1.msra.mxu0 0.0
    %1346 = vmatprep.mubr.f32.mxu0 0.0
    %v1347 = vand.u32 %v990, 4294901760
    %v1348 = vsub.f32 %v990, %v1347
    %v1349 = vand.u32 %v1348, 4294901760
    %1350 = vmatmul.mubr.f32.gmra.mrb[0].mxu0 %v1349
    %v1351 = vpop.f32.mrb[0].mxu0
    %v1352 = vadd.f32 %v1271, %v1351
    %v1353 = vpop.f32.mrb[0].mxu0
    %1354 = vdwg.mxu0
    %1355 = vmatprep.subr.mxu0 0.0
    %v1356 = vand.u32 %v295, 4294901760
    %v1357 = vsub.f32 %v295, %v1356
    %v1358 = vand.u32 %v1357, 4294901760
    %1359 = vmatpush1.msra.mxu0 %v1358
    %1360 = vmatprep.subr.mxu0 0.0
    %v1361 = vand.u32 %v296, 4294901760
    %v1362 = vsub.f32 %v296, %v1361
    %v1363 = vand.u32 %v1362, 4294901760
    %1364 = vmatpush1.msra.mxu0 %v1363
    %1365 = vmatprep.subr.mxu0 0.0
    %v1366 = vand.u32 %v297, 4294901760
    %v1367 = vsub.f32 %v297, %v1366
    %v1368 = vand.u32 %v1367, 4294901760
    %1369 = vmatpush1.msra.mxu0 %v1368
    %1370 = vmatprep.subr.mxu0 0.0
    %v1371 = vand.u32 %v298, 4294901760
    %v1372 = vsub.f32 %v298, %v1371
    %v1373 = vand.u32 %v1372, 4294901760
    %1374 = vmatpush1.msra.mxu0 %v1373
    %1375 = vmatprep.subr.mxu0 0.0
    %v1376 = vand.u32 %v299, 4294901760
    %v1377 = vsub.f32 %v299, %v1376
    %v1378 = vand.u32 %v1377, 4294901760
    %1379 = vmatpush1.msra.mxu0 %v1378
    %1380 = vmatprep.subr.mxu0 0.0
    %v1381 = vand.u32 %v300, 4294901760
    %v1382 = vsub.f32 %v300, %v1381
    %v1383 = vand.u32 %v1382, 4294901760
    %1384 = vmatpush1.msra.mxu0 %v1383
    %1385 = vmatprep.subr.mxu0 0.0
    %v1386 = vand.u32 %v301, 4294901760
    %v1387 = vsub.f32 %v301, %v1386
    %v1388 = vand.u32 %v1387, 4294901760
    %1389 = vmatpush1.msra.mxu0 %v1388
    %1390 = vmatprep.subr.mxu0 0.0
    %v1391 = vand.u32 %v302, 4294901760
    %v1392 = vsub.f32 %v302, %v1391
    %v1393 = vand.u32 %v1392, 4294901760
    %1394 = vmatpush1.msra.mxu0 %v1393
    %1395 = vmatprep.subr.mxu0 0.0
    %1396 = vmatpush1.msra.mxu0 0.0
    %1397 = vmatprep.subr.mxu0 0.0
    %1398 = vmatpush1.msra.mxu0 0.0
    %1399 = vmatprep.subr.mxu0 0.0
    %1400 = vmatpush1.msra.mxu0 0.0
    %1401 = vmatprep.subr.mxu0 0.0
    %1402 = vmatpush1.msra.mxu0 0.0
    %1403 = vmatprep.subr.mxu0 0.0
    %1404 = vmatpush1.msra.mxu0 0.0
    %1405 = vmatprep.subr.mxu0 0.0
    %1406 = vmatpush1.msra.mxu0 0.0
    %1407 = vmatprep.subr.mxu0 0.0
    %1408 = vmatpush1.msra.mxu0 0.0
    %1409 = vmatprep.subr.mxu0 0.0
    %1410 = vmatpush1.msra.mxu0 0.0
    %1411 = vmatprep.subr.mxu0 0.0
    %1412 = vmatpush1.msra.mxu0 0.0
    %1413 = vmatprep.subr.mxu0 0.0
    %1414 = vmatpush1.msra.mxu0 0.0
    %1415 = vmatprep.subr.mxu0 0.0
    %1416 = vmatpush1.msra.mxu0 0.0
    %1417 = vmatprep.subr.mxu0 0.0
    %1418 = vmatpush1.msra.mxu0 0.0
    %1419 = vmatprep.subr.mxu0 0.0
    %1420 = vmatpush1.msra.mxu0 0.0
    %1421 = vmatprep.subr.mxu0 0.0
    %1422 = vmatpush1.msra.mxu0 0.0
    %1423 = vmatprep.subr.mxu0 0.0
    %1424 = vmatpush1.msra.mxu0 0.0
    %1425 = vmatprep.subr.mxu0 0.0
    %1426 = vmatpush1.msra.mxu0 0.0
    %1427 = vmatprep.subr.mxu0 0.0
    %1428 = vmatpush1.msra.mxu0 0.0
    %1429 = vmatprep.subr.mxu0 0.0
    %1430 = vmatpush1.msra.mxu0 0.0
    %1431 = vmatprep.subr.mxu0 0.0
    %1432 = vmatpush1.msra.mxu0 0.0
    %1433 = vmatprep.subr.mxu0 0.0
    %1434 = vmatpush1.msra.mxu0 0.0
    %1435 = vmatprep.subr.mxu0 0.0
    %1436 = vmatpush1.msra.mxu0 0.0
    %1437 = vmatprep.subr.mxu0 0.0
    %1438 = vmatpush1.msra.mxu0 0.0
    %1439 = vmatprep.subr.mxu0 0.0
    %1440 = vmatpush1.msra.mxu0 0.0
    %1441 = vmatprep.subr.mxu0 0.0
    %1442 = vmatpush1.msra.mxu0 0.0
    %1443 = vmatprep.mubr.f32.mxu0 0.0
    %v1444 = vand.u32 %v990, 4294901760
    %1445 = vmatmul.mubr.f32.gmra.mrb[0].mxu0 %v1444
    %v1446 = vpop.f32.mrb[0].mxu0
    %v1447 = vadd.f32 %v1352, %v1446
    %v1448 = vpop.f32.mrb[0].mxu0
    %1449 = vdwg.mxu0
    %1450 = vmatprep.subr.mxu0 0.0
    %v1451 = vand.u32 %v295, 4294901760
    %1452 = vmatpush1.msra.mxu0 %v1451
    %1453 = vmatprep.subr.mxu0 0.0
    %v1454 = vand.u32 %v296, 4294901760
    %1455 = vmatpush1.msra.mxu0 %v1454
    %1456 = vmatprep.subr.mxu0 0.0
    %v1457 = vand.u32 %v297, 4294901760
    %1458 = vmatpush1.msra.mxu0 %v1457
    %1459 = vmatprep.subr.mxu0 0.0
    %v1460 = vand.u32 %v298, 4294901760
    %1461 = vmatpush1.msra.mxu0 %v1460
    %1462 = vmatprep.subr.mxu0 0.0
    %v1463 = vand.u32 %v299, 4294901760
    %1464 = vmatpush1.msra.mxu0 %v1463
    %1465 = vmatprep.subr.mxu0 0.0
    %v1466 = vand.u32 %v300, 4294901760
    %1467 = vmatpush1.msra.mxu0 %v1466
    %1468 = vmatprep.subr.mxu0 0.0
    %v1469 = vand.u32 %v301, 4294901760
    %1470 = vmatpush1.msra.mxu0 %v1469
    %1471 = vmatprep.subr.mxu0 0.0
    %v1472 = vand.u32 %v302, 4294901760
    %1473 = vmatpush1.msra.mxu0 %v1472
    %1474 = vmatprep.subr.mxu0 0.0
    %1475 = vmatpush1.msra.mxu0 0.0
    %1476 = vmatprep.subr.mxu0 0.0
    %1477 = vmatpush1.msra.mxu0 0.0
    %1478 = vmatprep.subr.mxu0 0.0
    %1479 = vmatpush1.msra.mxu0 0.0
    %1480 = vmatprep.subr.mxu0 0.0
    %1481 = vmatpush1.msra.mxu0 0.0
    %1482 = vmatprep.subr.mxu0 0.0
    %1483 = vmatpush1.msra.mxu0 0.0
    %1484 = vmatprep.subr.mxu0 0.0
    %1485 = vmatpush1.msra.mxu0 0.0
    %1486 = vmatprep.subr.mxu0 0.0
    %1487 = vmatpush1.msra.mxu0 0.0
    %1488 = vmatprep.subr.mxu0 0.0
    %1489 = vmatpush1.msra.mxu0 0.0
    %1490 = vmatprep.subr.mxu0 0.0
    %1491 = vmatpush1.msra.mxu0 0.0
    %1492 = vmatprep.subr.mxu0 0.0
    %1493 = vmatpush1.msra.mxu0 0.0
    %1494 = vmatprep.subr.mxu0 0.0
    %1495 = vmatpush1.msra.mxu0 0.0
    %1496 = vmatprep.subr.mxu0 0.0
    %1497 = vmatpush1.msra.mxu0 0.0
    %1498 = vmatprep.subr.mxu0 0.0
    %1499 = vmatpush1.msra.mxu0 0.0
    %1500 = vmatprep.subr.mxu0 0.0
    %1501 = vmatpush1.msra.mxu0 0.0
    %1502 = vmatprep.subr.mxu0 0.0
    %1503 = vmatpush1.msra.mxu0 0.0
    %1504 = vmatprep.subr.mxu0 0.0
    %1505 = vmatpush1.msra.mxu0 0.0
    %1506 = vmatprep.subr.mxu0 0.0
    %1507 = vmatpush1.msra.mxu0 0.0
    %1508 = vmatprep.subr.mxu0 0.0
    %1509 = vmatpush1.msra.mxu0 0.0
    %1510 = vmatprep.subr.mxu0 0.0
    %1511 = vmatpush1.msra.mxu0 0.0
    %1512 = vmatprep.subr.mxu0 0.0
    %1513 = vmatpush1.msra.mxu0 0.0
    %1514 = vmatprep.subr.mxu0 0.0
    %1515 = vmatpush1.msra.mxu0 0.0
    %1516 = vmatprep.subr.mxu0 0.0
    %1517 = vmatpush1.msra.mxu0 0.0
    %1518 = vmatprep.subr.mxu0 0.0
    %1519 = vmatpush1.msra.mxu0 0.0
    %1520 = vmatprep.subr.mxu0 0.0
    %1521 = vmatpush1.msra.mxu0 0.0
    %1522 = vmatprep.mubr.f32.mxu0 0.0
    %v1523 = vand.u32 %v990, 4294901760
    %1524 = vmatmul.mubr.f32.gmra.mrb[0].mxu0 %v1523
    %v1525 = vpop.f32.mrb[0].mxu0
    %v1526 = vadd.f32 %v1447, %v1525
    %v1527 = vpop.f32.mrb[0].mxu0
    %1528 = vdwg.mxu0
    %v1529 = vxor.u32 %v1526, 2147483648
    %v1530 = vmul.f32 %v1529, 1.442695
    %v1531 = vpow.pop %v1530
    %v1532 = vadd.f32 %v1531, 1.0
    %v1533 = vrcp.pop %v1532
    %v1534 = vmul.f32 1.0, %v1533
    %v1535 = vtanh.pop %v1526
    %1536 = vrot.lane.b32.xlu0 %v278, 64
    %v1537 = vpop.permute.xlu0 %1536
    %v1539 = vmul.f32 %v1534, %v1537
    %1541 = vrot.lane.b32.xlu0 %v1535, 32
    %v1542 = vpop.permute.xlu0 %1541
    %v1544 = vmul.f32 %v1534, %v1542
    %1546 = vrot.lane.b32.xlu0 %v1544, 32
    %v1547 = vpop.permute.xlu0 %1546
    %v1549 = vadd.f32 %v1539, %v1547
    %v1550 = vtanh.pop %v1549
    %1552 = vrot.lane.b32.xlu0 %v1550, 32
    %v1553 = vpop.permute.xlu0 %1552
    %v1555 = vmul.f32 %v1534, %v1553
    %v1556 = vld [vmem:[#allocation6 + $0xd0] sm:$0xff]
    %v1557 = vld [vmem:[#allocation6 + $0xd8] sm:$0xff]
    %v1558 = vld [vmem:[#allocation6 + $0xe0] sm:$0xff]
    %v1559 = vld [vmem:[#allocation6 + $0xe8] sm:$0xff]
    %v1560 = vld [vmem:[#allocation6 + $0x8a] sm:$0x1]
    %1562 = vrot.lane.b32.xlu0 %v1555, 64
    %v1563 = vpop.permute.xlu0 %1562
    %v1564 = vsel %vm90, %v1563, 0
    %1566 = vmatprep.subr.mxu0 0.0
    %v1567 = vand.u32 %v1556, 4294901760
    %1568 = vmatpush1.msra.mxu0 %v1567
    %1569 = vmatprep.subr.mxu0 0.0
    %v1570 = vand.u32 %v1557, 4294901760
    %1571 = vmatpush1.msra.mxu0 %v1570
    %1572 = vmatprep.subr.mxu0 0.0
    %v1573 = vand.u32 %v1558, 4294901760
    %1574 = vmatpush1.msra.mxu0 %v1573
    %1575 = vmatprep.subr.mxu0 0.0
    %v1576 = vand.u32 %v1559, 4294901760
    %1577 = vmatpush1.msra.mxu0 %v1576
    %1578 = vmatprep.subr.mxu0 0.0
    %1579 = vmatpush1.msra.mxu0 0.0
    %1580 = vmatprep.subr.mxu0 0.0
    %1581 = vmatpush1.msra.mxu0 0.0
    %1582 = vmatprep.subr.mxu0 0.0
    %1583 = vmatpush1.msra.mxu0 0.0
    %1584 = vmatprep.subr.mxu0 0.0
    %1585 = vmatpush1.msra.mxu0 0.0
    %1586 = vmatprep.subr.mxu0 0.0
    %1587 = vmatpush1.msra.mxu0 0.0
    %1588 = vmatprep.subr.mxu0 0.0
    %1589 = vmatpush1.msra.mxu0 0.0
    %1590 = vmatprep.subr.mxu0 0.0
    %1591 = vmatpush1.msra.mxu0 0.0
    %1592 = vmatprep.subr.mxu0 0.0
    %1593 = vmatpush1.msra.mxu0 0.0
    %1594 = vmatprep.subr.mxu0 0.0
    %1595 = vmatpush1.msra.mxu0 0.0
    %1596 = vmatprep.subr.mxu0 0.0
    %1597 = vmatpush1.msra.mxu0 0.0
    %1598 = vmatprep.subr.mxu0 0.0
    %1599 = vmatpush1.msra.mxu0 0.0
    %1600 = vmatprep.subr.mxu0 0.0
    %1601 = vmatpush1.msra.mxu0 0.0
    %1602 = vmatprep.subr.mxu0 0.0
    %1603 = vmatpush1.msra.mxu0 0.0
    %1604 = vmatprep.subr.mxu0 0.0
    %1605 = vmatpush1.msra.mxu0 0.0
    %1606 = vmatprep.subr.mxu0 0.0
    %1607 = vmatpush1.msra.mxu0 0.0
    %1608 = vmatprep.subr.mxu0 0.0
    %1609 = vmatpush1.msra.mxu0 0.0
    %1610 = vmatprep.subr.mxu0 0.0
    %1611 = vmatpush1.msra.mxu0 0.0
    %1612 = vmatprep.subr.mxu0 0.0
    %1613 = vmatpush1.msra.mxu0 0.0
    %1614 = vmatprep.subr.mxu0 0.0
    %1615 = vmatpush1.msra.mxu0 0.0
    %1616 = vmatprep.subr.mxu0 0.0
    %1617 = vmatpush1.msra.mxu0 0.0
    %1618 = vmatprep.subr.mxu0 0.0
    %1619 = vmatpush1.msra.mxu0 0.0
    %1620 = vmatprep.subr.mxu0 0.0
    %1621 = vmatpush1.msra.mxu0 0.0
    %1622 = vmatprep.subr.mxu0 0.0
    %1623 = vmatpush1.msra.mxu0 0.0
    %1624 = vmatprep.subr.mxu0 0.0
    %1625 = vmatpush1.msra.mxu0 0.0
    %1626 = vmatprep.subr.mxu0 0.0
    %1627 = vmatpush1.msra.mxu0 0.0
    %1628 = vmatprep.subr.mxu0 0.0
    %1629 = vmatpush1.msra.mxu0 0.0
    %1630 = vmatprep.subr.mxu0 0.0
    %1631 = vmatpush1.msra.mxu0 0.0
    %1632 = vmatprep.subr.mxu0 0.0
    %1633 = vmatpush1.msra.mxu0 0.0
    %1634 = vmatprep.mubr.f32.mxu0 0.0
    %v1635 = vand.u32 %v1564, 4294901760
    %v1636 = vsub.f32 %v1564, %v1635
    %v1637 = vand.u32 %v1636, 4294901760
    %v1638 = vsub.f32 %v1636, %v1637
    %v1639 = vand.u32 %v1638, 4294901760
    %1640 = vmatmul.mubr.f32.gmra.mrb[0].mxu0 %v1639
    %v1641 = vpop.f32.mrb[0].mxu0
    %v1642 = vadd.f32 0.0, %v1641
    %v1643 = vpop.f32.mrb[0].mxu0
    %1644 = vdwg.mxu0
    %1645 = vmatprep.subr.mxu0 0.0
    %v1646 = vand.u32 %v1556, 4294901760
    %v1647 = vsub.f32 %v1556, %v1646
    %v1648 = vand.u32 %v1647, 4294901760
    %v1649 = vsub.f32 %v1647, %v1648
    %v1650 = vand.u32 %v1649, 4294901760
    %1651 = vmatpush1.msra.mxu0 %v1650
    %1652 = vmatprep.subr.mxu0 0.0
    %v1653 = vand.u32 %v1557, 4294901760
    %v1654 = vsub.f32 %v1557, %v1653
    %v1655 = vand.u32 %v1654, 4294901760
    %v1656 = vsub.f32 %v1654, %v1655
    %v1657 = vand.u32 %v1656, 4294901760
    %1658 = vmatpush1.msra.mxu0 %v1657
    %1659 = vmatprep.subr.mxu0 0.0
    %v1660 = vand.u32 %v1558, 4294901760
    %v1661 = vsub.f32 %v1558, %v1660
    %v1662 = vand.u32 %v1661, 4294901760
    %v1663 = vsub.f32 %v1661, %v1662
    %v1664 = vand.u32 %v1663, 4294901760
    %1665 = vmatpush1.msra.mxu0 %v1664
    %1666 = vmatprep.subr.mxu0 0.0
    %v1667 = vand.u32 %v1559, 4294901760
    %v1668 = vsub.f32 %v1559, %v1667
    %v1669 = vand.u32 %v1668, 4294901760
    %v1670 = vsub.f32 %v1668, %v1669
    %v1671 = vand.u32 %v1670, 4294901760
    %1672 = vmatpush1.msra.mxu0 %v1671
    %1673 = vmatprep.subr.mxu0 0.0
    %1674 = vmatpush1.msra.mxu0 0.0
    %1675 = vmatprep.subr.mxu0 0.0
    %1676 = vmatpush1.msra.mxu0 0.0
    %1677 = vmatprep.subr.mxu0 0.0
    %1678 = vmatpush1.msra.mxu0 0.0
    %1679 = vmatprep.subr.mxu0 0.0
    %1680 = vmatpush1.msra.mxu0 0.0
    %1681 = vmatprep.subr.mxu0 0.0
    %1682 = vmatpush1.msra.mxu0 0.0
    %1683 = vmatprep.subr.mxu0 0.0
    %1684 = vmatpush1.msra.mxu0 0.0
    %1685 = vmatprep.subr.mxu0 0.0
    %1686 = vmatpush1.msra.mxu0 0.0
    %1687 = vmatprep.subr.mxu0 0.0
    %1688 = vmatpush1.msra.mxu0 0.0
    %1689 = vmatprep.subr.mxu0 0.0
    %1690 = vmatpush1.msra.mxu0 0.0
    %1691 = vmatprep.subr.mxu0 0.0
    %1692 = vmatpush1.msra.mxu0 0.0
    %1693 = vmatprep.subr.mxu0 0.0
    %1694 = vmatpush1.msra.mxu0 0.0
    %1695 = vmatprep.subr.mxu0 0.0
    %1696 = vmatpush1.msra.mxu0 0.0
    %1697 = vmatprep.subr.mxu0 0.0
    %1698 = vmatpush1.msra.mxu0 0.0
    %1699 = vmatprep.subr.mxu0 0.0
    %1700 = vmatpush1.msra.mxu0 0.0
    %1701 = vmatprep.subr.mxu0 0.0
    %1702 = vmatpush1.msra.mxu0 0.0
    %1703 = vmatprep.subr.mxu0 0.0
    %1704 = vmatpush1.msra.mxu0 0.0
    %1705 = vmatprep.subr.mxu0 0.0
    %1706 = vmatpush1.msra.mxu0 0.0
    %1707 = vmatprep.subr.mxu0 0.0
    %1708 = vmatpush1.msra.mxu0 0.0
    %1709 = vmatprep.subr.mxu0 0.0
    %1710 = vmatpush1.msra.mxu0 0.0
    %1711 = vmatprep.subr.mxu0 0.0
    %1712 = vmatpush1.msra.mxu0 0.0
    %1713 = vmatprep.subr.mxu0 0.0
    %1714 = vmatpush1.msra.mxu0 0.0
    %1715 = vmatprep.subr.mxu0 0.0
    %1716 = vmatpush1.msra.mxu0 0.0
    %1717 = vmatprep.subr.mxu0 0.0
    %1718 = vmatpush1.msra.mxu0 0.0
    %1719 = vmatprep.subr.mxu0 0.0
    %1720 = vmatpush1.msra.mxu0 0.0
    %1721 = vmatprep.subr.mxu0 0.0
    %1722 = vmatpush1.msra.mxu0 0.0
    %1723 = vmatprep.subr.mxu0 0.0
    %1724 = vmatpush1.msra.mxu0 0.0
    %1725 = vmatprep.subr.mxu0 0.0
    %1726 = vmatpush1.msra.mxu0 0.0
    %1727 = vmatprep.subr.mxu0 0.0
    %1728 = vmatpush1.msra.mxu0 0.0
    %1729 = vmatprep.mubr.f32.mxu0 0.0
    %v1730 = vand.u32 %v1564, 4294901760
    %1731 = vmatmul.mubr.f32.gmra.mrb[0].mxu0 %v1730
    %v1732 = vpop.f32.mrb[0].mxu0
    %v1733 = vadd.f32 %v1642, %v1732
    %v1734 = vpop.f32.mrb[0].mxu0
    %1735 = vdwg.mxu0
    %1736 = vmatprep.subr.mxu0 0.0
    %v1737 = vand.u32 %v1556, 4294901760
    %v1738 = vsub.f32 %v1556, %v1737
    %1739 = vmatpush1.msra.mxu0 %v1738
    %1740 = vmatprep.subr.mxu0 0.0
    %v1741 = vand.u32 %v1557, 4294901760
    %v1742 = vsub.f32 %v1557, %v1741
    %1743 = vmatpush1.msra.mxu0 %v1742
    %1744 = vmatprep.subr.mxu0 0.0
    %v1745 = vand.u32 %v1558, 4294901760
    %v1746 = vsub.f32 %v1558, %v1745
    %1747 = vmatpush1.msra.mxu0 %v1746
    %1748 = vmatprep.subr.mxu0 0.0
    %v1749 = vand.u32 %v1559, 4294901760
    %v1750 = vsub.f32 %v1559, %v1749
    %1751 = vmatpush1.msra.mxu0 %v1750
    %1752 = vmatprep.subr.mxu0 0.0
    %1753 = vmatpush1.msra.mxu0 0.0
    %1754 = vmatprep.subr.mxu0 0.0
    %1755 = vmatpush1.msra.mxu0 0.0
    %1756 = vmatprep.subr.mxu0 0.0
    %1757 = vmatpush1.msra.mxu0 0.0
    %1758 = vmatprep.subr.mxu0 0.0
    %1759 = vmatpush1.msra.mxu0 0.0
    %1760 = vmatprep.subr.mxu0 0.0
    %1761 = vmatpush1.msra.mxu0 0.0
    %1762 = vmatprep.subr.mxu0 0.0
    %1763 = vmatpush1.msra.mxu0 0.0
    %1764 = vmatprep.subr.mxu0 0.0
    %1765 = vmatpush1.msra.mxu0 0.0
    %1766 = vmatprep.subr.mxu0 0.0
    %1767 = vmatpush1.msra.mxu0 0.0
    %1768 = vmatprep.subr.mxu0 0.0
    %1769 = vmatpush1.msra.mxu0 0.0
    %1770 = vmatprep.subr.mxu0 0.0
    %1771 = vmatpush1.msra.mxu0 0.0
    %1772 = vmatprep.subr.mxu0 0.0
    %1773 = vmatpush1.msra.mxu0 0.0
    %1774 = vmatprep.subr.mxu0 0.0
    %1775 = vmatpush1.msra.mxu0 0.0
    %1776 = vmatprep.subr.mxu0 0.0
    %1777 = vmatpush1.msra.mxu0 0.0
    %1778 = vmatprep.subr.mxu0 0.0
    %1779 = vmatpush1.msra.mxu0 0.0
    %1780 = vmatprep.subr.mxu0 0.0
    %1781 = vmatpush1.msra.mxu0 0.0
    %1782 = vmatprep.subr.mxu0 0.0
    %1783 = vmatpush1.msra.mxu0 0.0
    %1784 = vmatprep.subr.mxu0 0.0
    %1785 = vmatpush1.msra.mxu0 0.0
    %1786 = vmatprep.subr.mxu0 0.0
    %1787 = vmatpush1.msra.mxu0 0.0
    %1788 = vmatprep.subr.mxu0 0.0
    %1789 = vmatpush1.msra.mxu0 0.0
    %1790 = vmatprep.subr.mxu0 0.0
    %1791 = vmatpush1.msra.mxu0 0.0
    %1792 = vmatprep.subr.mxu0 0.0
    %1793 = vmatpush1.msra.mxu0 0.0
    %1794 = vmatprep.subr.mxu0 0.0
    %1795 = vmatpush1.msra.mxu0 0.0
    %1796 = vmatprep.subr.mxu0 0.0
    %1797 = vmatpush1.msra.mxu0 0.0
    %1798 = vmatprep.subr.mxu0 0.0
    %1799 = vmatpush1.msra.mxu0 0.0
    %1800 = vmatprep.subr.mxu0 0.0
    %1801 = vmatpush1.msra.mxu0 0.0
    %1802 = vmatprep.subr.mxu0 0.0
    %1803 = vmatpush1.msra.mxu0 0.0
    %1804 = vmatprep.subr.mxu0 0.0
    %1805 = vmatpush1.msra.mxu0 0.0
    %1806 = vmatprep.subr.mxu0 0.0
    %1807 = vmatpush1.msra.mxu0 0.0
    %1808 = vmatprep.mubr.f32.mxu0 0.0
    %v1809 = vand.u32 %v1564, 4294901760
    %v1810 = vsub.f32 %v1564, %v1809
    %1811 = vmatmul.mubr.f32.gmra.mrb[0].mxu0 %v1810
    %v1812 = vpop.f32.mrb[0].mxu0
    %v1813 = vadd.f32 %v1733, %v1812
    %v1814 = vpop.f32.mrb[0].mxu0
    %1815 = vdwg.mxu0
    %1816 = vmatprep.subr.mxu0 0.0
    %v1817 = vand.u32 %v1556, 4294901760
    %1818 = vmatpush1.msra.mxu0 %v1817
    %1819 = vmatprep.subr.mxu0 0.0
    %v1820 = vand.u32 %v1557, 4294901760
    %1821 = vmatpush1.msra.mxu0 %v1820
    %1822 = vmatprep.subr.mxu0 0.0
    %v1823 = vand.u32 %v1558, 4294901760
    %1824 = vmatpush1.msra.mxu0 %v1823
    %1825 = vmatprep.subr.mxu0 0.0
    %v1826 = vand.u32 %v1559, 4294901760
    %1827 = vmatpush1.msra.mxu0 %v1826
    %1828 = vmatprep.subr.mxu0 0.0
    %1829 = vmatpush1.msra.mxu0 0.0
    %1830 = vmatprep.subr.mxu0 0.0
    %1831 = vmatpush1.msra.mxu0 0.0
    %1832 = vmatprep.subr.mxu0 0.0
    %1833 = vmatpush1.msra.mxu0 0.0
    %1834 = vmatprep.subr.mxu0 0.0
    %1835 = vmatpush1.msra.mxu0 0.0
    %1836 = vmatprep.subr.mxu0 0.0
    %1837 = vmatpush1.msra.mxu0 0.0
    %1838 = vmatprep.subr.mxu0 0.0
    %1839 = vmatpush1.msra.mxu0 0.0
    %1840 = vmatprep.subr.mxu0 0.0
    %1841 = vmatpush1.msra.mxu0 0.0
    %1842 = vmatprep.subr.mxu0 0.0
    %1843 = vmatpush1.msra.mxu0 0.0
    %1844 = vmatprep.subr.mxu0 0.0
    %1845 = vmatpush1.msra.mxu0 0.0
    %1846 = vmatprep.subr.mxu0 0.0
    %1847 = vmatpush1.msra.mxu0 0.0
    %1848 = vmatprep.subr.mxu0 0.0
    %1849 = vmatpush1.msra.mxu0 0.0
    %1850 = vmatprep.subr.mxu0 0.0
    %1851 = vmatpush1.msra.mxu0 0.0
    %1852 = vmatprep.subr.mxu0 0.0
    %1853 = vmatpush1.msra.mxu0 0.0
    %1854 = vmatprep.subr.mxu0 0.0
    %1855 = vmatpush1.msra.mxu0 0.0
    %1856 = vmatprep.subr.mxu0 0.0
    %1857 = vmatpush1.msra.mxu0 0.0
    %1858 = vmatprep.subr.mxu0 0.0
    %1859 = vmatpush1.msra.mxu0 0.0
    %1860 = vmatprep.subr.mxu0 0.0
    %1861 = vmatpush1.msra.mxu0 0.0
    %1862 = vmatprep.subr.mxu0 0.0
    %1863 = vmatpush1.msra.mxu0 0.0
    %1864 = vmatprep.subr.mxu0 0.0
    %1865 = vmatpush1.msra.mxu0 0.0
    %1866 = vmatprep.subr.mxu0 0.0
    %1867 = vmatpush1.msra.mxu0 0.0
    %1868 = vmatprep.subr.mxu0 0.0
    %1869 = vmatpush1.msra.mxu0 0.0
    %1870 = vmatprep.subr.mxu0 0.0
    %1871 = vmatpush1.msra.mxu0 0.0
    %1872 = vmatprep.subr.mxu0 0.0
    %1873 = vmatpush1.msra.mxu0 0.0
    %1874 = vmatprep.subr.mxu0 0.0
    %1875 = vmatpush1.msra.mxu0 0.0
    %1876 = vmatprep.subr.mxu0 0.0
    %1877 = vmatpush1.msra.mxu0 0.0
    %1878 = vmatprep.subr.mxu0 0.0
    %1879 = vmatpush1.msra.mxu0 0.0
    %1880 = vmatprep.subr.mxu0 0.0
    %1881 = vmatpush1.msra.mxu0 0.0
    %1882 = vmatprep.subr.mxu0 0.0
    %1883 = vmatpush1.msra.mxu0 0.0
    %1884 = vmatprep.mubr.f32.mxu0 0.0
    %v1885 = vand.u32 %v1564, 4294901760
    %v1886 = vsub.f32 %v1564, %v1885
    %v1887 = vand.u32 %v1886, 4294901760
    %1888 = vmatmul.mubr.f32.gmra.mrb[0].mxu0 %v1887
    %v1889 = vpop.f32.mrb[0].mxu0
    %v1890 = vadd.f32 %v1813, %v1889
    %v1891 = vpop.f32.mrb[0].mxu0
    %1892 = vdwg.mxu0
    %1893 = vmatprep.subr.mxu0 0.0
    %v1894 = vand.u32 %v1556, 4294901760
    %v1895 = vsub.f32 %v1556, %v1894
    %v1896 = vand.u32 %v1895, 4294901760
    %1897 = vmatpush1.msra.mxu0 %v1896
    %1898 = vmatprep.subr.mxu0 0.0
    %v1899 = vand.u32 %v1557, 4294901760
    %v1900 = vsub.f32 %v1557, %v1899
    %v1901 = vand.u32 %v1900, 4294901760
    %1902 = vmatpush1.msra.mxu0 %v1901
    %1903 = vmatprep.subr.mxu0 0.0
    %v1904 = vand.u32 %v1558, 4294901760
    %v1905 = vsub.f32 %v1558, %v1904
    %v1906 = vand.u32 %v1905, 4294901760
    %1907 = vmatpush1.msra.mxu0 %v1906
    %1908 = vmatprep.subr.mxu0 0.0
    %v1909 = vand.u32 %v1559, 4294901760
    %v1910 = vsub.f32 %v1559, %v1909
    %v1911 = vand.u32 %v1910, 4294901760
    %1912 = vmatpush1.msra.mxu0 %v1911
    %1913 = vmatprep.subr.mxu0 0.0
    %1914 = vmatpush1.msra.mxu0 0.0
    %1915 = vmatprep.subr.mxu0 0.0
    %1916 = vmatpush1.msra.mxu0 0.0
    %1917 = vmatprep.subr.mxu0 0.0
    %1918 = vmatpush1.msra.mxu0 0.0
    %1919 = vmatprep.subr.mxu0 0.0
    %1920 = vmatpush1.msra.mxu0 0.0
    %1921 = vmatprep.subr.mxu0 0.0
    %1922 = vmatpush1.msra.mxu0 0.0
    %1923 = vmatprep.subr.mxu0 0.0
    %1924 = vmatpush1.msra.mxu0 0.0
    %1925 = vmatprep.subr.mxu0 0.0
    %1926 = vmatpush1.msra.mxu0 0.0
    %1927 = vmatprep.subr.mxu0 0.0
    %1928 = vmatpush1.msra.mxu0 0.0
    %1929 = vmatprep.subr.mxu0 0.0
    %1930 = vmatpush1.msra.mxu0 0.0
    %1931 = vmatprep.subr.mxu0 0.0
    %1932 = vmatpush1.msra.mxu0 0.0
    %1933 = vmatprep.subr.mxu0 0.0
    %1934 = vmatpush1.msra.mxu0 0.0
    %1935 = vmatprep.subr.mxu0 0.0
    %1936 = vmatpush1.msra.mxu0 0.0
    %1937 = vmatprep.subr.mxu0 0.0
    %1938 = vmatpush1.msra.mxu0 0.0
    %1939 = vmatprep.subr.mxu0 0.0
    %1940 = vmatpush1.msra.mxu0 0.0
    %1941 = vmatprep.subr.mxu0 0.0
    %1942 = vmatpush1.msra.mxu0 0.0
    %1943 = vmatprep.subr.mxu0 0.0
    %1944 = vmatpush1.msra.mxu0 0.0
    %1945 = vmatprep.subr.mxu0 0.0
    %1946 = vmatpush1.msra.mxu0 0.0
    %1947 = vmatprep.subr.mxu0 0.0
    %1948 = vmatpush1.msra.mxu0 0.0
    %1949 = vmatprep.subr.mxu0 0.0
    %1950 = vmatpush1.msra.mxu0 0.0
    %1951 = vmatprep.subr.mxu0 0.0
    %1952 = vmatpush1.msra.mxu0 0.0
    %1953 = vmatprep.subr.mxu0 0.0
    %1954 = vmatpush1.msra.mxu0 0.0
    %1955 = vmatprep.subr.mxu0 0.0
    %1956 = vmatpush1.msra.mxu0 0.0
    %1957 = vmatprep.subr.mxu0 0.0
    %1958 = vmatpush1.msra.mxu0 0.0
    %1959 = vmatprep.subr.mxu0 0.0
    %1960 = vmatpush1.msra.mxu0 0.0
    %1961 = vmatprep.subr.mxu0 0.0
    %1962 = vmatpush1.msra.mxu0 0.0
    %1963 = vmatprep.subr.mxu0 0.0
    %1964 = vmatpush1.msra.mxu0 0.0
    %1965 = vmatprep.subr.mxu0 0.0
    %1966 = vmatpush1.msra.mxu0 0.0
    %1967 = vmatprep.subr.mxu0 0.0
    %1968 = vmatpush1.msra.mxu0 0.0
    %1969 = vmatprep.mubr.f32.mxu0 0.0
    %v1970 = vand.u32 %v1564, 4294901760
    %1971 = vmatmul.mubr.f32.gmra.mrb[0].mxu0 %v1970
    %v1972 = vpop.f32.mrb[0].mxu0
    %v1973 = vadd.f32 %v1890, %v1972
    %v1974 = vpop.f32.mrb[0].mxu0
    %1975 = vdwg.mxu0
    %1976 = vmatprep.subr.mxu0 0.0
    %v1977 = vand.u32 %v1556, 4294901760
    %1978 = vmatpush1.msra.mxu0 %v1977
    %1979 = vmatprep.subr.mxu0 0.0
    %v1980 = vand.u32 %v1557, 4294901760
    %1981 = vmatpush1.msra.mxu0 %v1980
    %1982 = vmatprep.subr.mxu0 0.0
    %v1983 = vand.u32 %v1558, 4294901760
    %1984 = vmatpush1.msra.mxu0 %v1983
    %1985 = vmatprep.subr.mxu0 0.0
    %v1986 = vand.u32 %v1559, 4294901760
    %1987 = vmatpush1.msra.mxu0 %v1986
    %1988 = vmatprep.subr.mxu0 0.0
    %1989 = vmatpush1.msra.mxu0 0.0
    %1990 = vmatprep.subr.mxu0 0.0
    %1991 = vmatpush1.msra.mxu0 0.0
    %1992 = vmatprep.subr.mxu0 0.0
    %1993 = vmatpush1.msra.mxu0 0.0
    %1994 = vmatprep.subr.mxu0 0.0
    %1995 = vmatpush1.msra.mxu0 0.0
    %1996 = vmatprep.subr.mxu0 0.0
    %1997 = vmatpush1.msra.mxu0 0.0
    %1998 = vmatprep.subr.mxu0 0.0
    %1999 = vmatpush1.msra.mxu0 0.0
    %2000 = vmatprep.subr.mxu0 0.0
    %2001 = vmatpush1.msra.mxu0 0.0
    %2002 = vmatprep.subr.mxu0 0.0
    %2003 = vmatpush1.msra.mxu0 0.0
    %2004 = vmatprep.subr.mxu0 0.0
    %2005 = vmatpush1.msra.mxu0 0.0
    %2006 = vmatprep.subr.mxu0 0.0
    %2007 = vmatpush1.msra.mxu0 0.0
    %2008 = vmatprep.subr.mxu0 0.0
    %2009 = vmatpush1.msra.mxu0 0.0
    %2010 = vmatprep.subr.mxu0 0.0
    %2011 = vmatpush1.msra.mxu0 0.0
    %2012 = vmatprep.subr.mxu0 0.0
    %2013 = vmatpush1.msra.mxu0 0.0
    %2014 = vmatprep.subr.mxu0 0.0
    %2015 = vmatpush1.msra.mxu0 0.0
    %2016 = vmatprep.subr.mxu0 0.0
    %2017 = vmatpush1.msra.mxu0 0.0
    %2018 = vmatprep.subr.mxu0 0.0
    %2019 = vmatpush1.msra.mxu0 0.0
    %2020 = vmatprep.subr.mxu0 0.0
    %2021 = vmatpush1.msra.mxu0 0.0
    %2022 = vmatprep.subr.mxu0 0.0
    %2023 = vmatpush1.msra.mxu0 0.0
    %2024 = vmatprep.subr.mxu0 0.0
    %2025 = vmatpush1.msra.mxu0 0.0
    %2026 = vmatprep.subr.mxu0 0.0
    %2027 = vmatpush1.msra.mxu0 0.0
    %2028 = vmatprep.subr.mxu0 0.0
    %2029 = vmatpush1.msra.mxu0 0.0
    %2030 = vmatprep.subr.mxu0 0.0
    %2031 = vmatpush1.msra.mxu0 0.0
    %2032 = vmatprep.subr.mxu0 0.0
    %2033 = vmatpush1.msra.mxu0 0.0
    %2034 = vmatprep.subr.mxu0 0.0
    %2035 = vmatpush1.msra.mxu0 0.0
    %2036 = vmatprep.subr.mxu0 0.0
    %2037 = vmatpush1.msra.mxu0 0.0
    %2038 = vmatprep.subr.mxu0 0.0
    %2039 = vmatpush1.msra.mxu0 0.0
    %2040 = vmatprep.subr.mxu0 0.0
    %2041 = vmatpush1.msra.mxu0 0.0
    %2042 = vmatprep.subr.mxu0 0.0
    %2043 = vmatpush1.msra.mxu0 0.0
    %2044 = vmatprep.mubr.f32.mxu0 0.0
    %v2045 = vand.u32 %v1564, 4294901760
    %2046 = vmatmul.mubr.f32.gmra.mrb[0].mxu0 %v2045
    %v2047 = vpop.f32.mrb[0].mxu0
    %v2048 = vadd.f32 %v1973, %v2047
    %v2049 = vpop.f32.mrb[0].mxu0
    %2050 = vdwg.mxu0
    %v2051 = vlaneseq
    %v2052 = vshrl.u32 %v2051, 7
    %v2053 = vsub.s32 0, %v2052
    %v2054 = vrot.slane %v1560, %v2053
    %v2055 = vadd.f32 %v2048, %v2054
    %2056 = vrot.lane.b32.xlu0 %v1555, 96
    %v2057 = vpop.permute.xlu0 %2056
    %2060 = vrot.lane.b32.xlu0 %v973, 32
    %v2061 = vpop.permute.xlu0 %2060
    %2064 = vrot.lane.b32.xlu0 %v1549, 64
    %v2065 = vpop.permute.xlu0 %2064
    %v2067 = vsel %vm90, %v982, %v2057
    %v2068 = vsel %vm94, %v2067, %v2061
    %v2069 = vsel %vm309, %v2068, %v2065
    %2070 = vst [vmem:[%s5] sm:$0xf] %v2069
    %vm2071 = vcmask 257024
    %2072 = vst.msk [vmem:[#allocation7] sm:$0xf] %vm2071, %v2055
    // Predicated region
    $region26: #{history_model_forward.1} parent=1 // pred_check
      _
    $region27: #{history_model_forward.1} parent=1 // pred_check_branch
      %2074 = sbr.rel (0) target = $region29
    $region28: #{history_model_forward.1} parent=1 // pred_region
      %s2076 = ssub.s32 64, 64
      %2077 = vsyncadd [#allocation4], %s2076
      %s2079 = sshll.u32 [#allocation7], 4
      %s2080 = int_to_ptr.vmem [resolvable:$true] %s2079
      %2082 = dma.vmem_to_hbm [thread:$0]  %s2080, 64, %s4, [#allocation4]
    $region29: #{history_model_forward.1} parent=1 // pred_fallthru
      _
    // Predicated region
    $region30: #{history_model_forward.1} parent=1 // pred_check
      _
    $region31: #{history_model_forward.1} parent=1 // pred_check_branch
      %2084 = sbr.rel (0) target = $region33
    $region32: #{history_model_forward.1} parent=1 // pred_region
      _
    $region33: #{history_model_forward.1} parent=1 // pred_fallthru
      _
    // Predicated region
    $region34: #{history_model_forward.1} parent=1 // pred_check
      _
    $region35: #{history_model_forward.1} parent=1 // pred_check_branch
      %2086 = sbr.rel (0) target = $region37
    $region36: #{history_model_forward.1} parent=1 // pred_region
      %2087 = dma.done [#allocation4], 64
    $region37: #{history_model_forward.1} parent=1 // pred_fallthru
      _
    // Predicated region
    $region38: #{history_model_forward.1} parent=1 // pred_check
      _
    $region39: #{history_model_forward.1} parent=1 // pred_check_branch
      %2089 = sbr.rel (0) target = $region41
    $region40: #{history_model_forward.1} parent=1 // pred_region
      _
    $region41: #{history_model_forward.1} parent=1 // pred_fallthru
      _
    %2090 = vsyncpa [#allocation3], 1
    %2091 = vsyncpa [#allocation4], 1
    %2092 = vsyncpa [#allocation5], 1

</llo_original>
